<compile_context>
chip_gen: v6e
topology: v6e:2x2x1
jax: 0.10.0
libtpu: 0.0.40
codegen_flags: <defaults>
</compile_context>

<pallas_src>
import functools

import jax
import jax.numpy as jnp
from jax.experimental import pallas as pl
from jax.experimental.pallas import tpu as pltpu


# ----------------------------------------------------------------------------
# Kernels
# ----------------------------------------------------------------------------

def _layernorm(y, gamma, beta, eps):
    """One-pass moments (s1, s2); biased variance like nn.LayerNorm. f32."""
    inv_d = 1.0 / y.shape[-1]
    s1 = jnp.sum(y, axis=-1, keepdims=True)
    s2 = jnp.sum(y * y, axis=-1, keepdims=True)
    mean = s1 * inv_d
    var = s2 * inv_d - mean * mean
    return (y - mean) * jax.lax.rsqrt(var + eps) * gamma + beta


def _residual_resident_kernel(x_ref, w1_ref, b1_ref, w2_ref, b2_ref, g_ref,
                              beta_ref, o_ref, *, eps):
    """Weights fully resident in VMEM; one grid step per row tile."""
    # fc1 + ReLU: bf16 x bf16 -> f32 accumulation (native MXU fast path).
    h = jnp.dot(x_ref[...].astype(jnp.bfloat16), w1_ref[...],
                preferred_element_type=jnp.float32)               # [tm, H]
    h = jnp.maximum(h + b1_ref[...], 0.0)

    # fc2: cast hidden to bf16 for the MXU, accumulate in f32.
    x_tr = jnp.dot(h.astype(jnp.bfloat16), w2_ref[...],
                   preferred_element_type=jnp.float32) + b2_ref[...]  # [tm, D]

    # Residual add: re-read x from VMEM here (tile is already resident; avoids
    # keeping an f32 copy live across both matmuls).
    y = x_ref[...].astype(jnp.float32) + x_tr
    o_ref[...] = _layernorm(y, g_ref[...], beta_ref[...], eps).astype(o_ref.dtype)


def _residual_streamed_kernel(x_ref, w1_ref, b1_ref, w2_ref, b2_ref, g_ref,
                              beta_ref, o_ref, acc_ref, *, eps):
    """H-tiled streaming path: grid=(M tiles, H tiles), f32 accumulator."""
    k = pl.program_id(1)

    @pl.when(k == 0)
    def _():
        acc_ref[...] = jnp.zeros_like(acc_ref)

    # fc1 tile + ReLU: [tm, D] x [D, th] -> [tm, th]
    h = jnp.dot(x_ref[...].astype(jnp.bfloat16), w1_ref[...],
                preferred_element_type=jnp.float32)
    h = jnp.maximum(h + b1_ref[...], 0.0)

    # fc2 tile accumulate: [tm, th] x [th, D] -> [tm, D]
    acc_ref[...] += jnp.dot(h.astype(jnp.bfloat16), w2_ref[...],
                            preferred_element_type=jnp.float32)

    @pl.when(k == pl.num_programs(1) - 1)
    def _():
        y = x_ref[...].astype(jnp.float32) + acc_ref[...] + b2_ref[...]
        o_ref[...] = _layernorm(y, g_ref[...], beta_ref[...], eps).astype(o_ref.dtype)


# ----------------------------------------------------------------------------
# Wrapper
# ----------------------------------------------------------------------------

def make_residual_params(w1, b1, w2, b2, gamma, beta):
    """Cast / lay out parameters ONCE (hoisted out of the per-call path).

    w1: [D, H], b1: [H], w2: [H, D], b2/gamma/beta: [D].
    """
    D, H = w1.shape
    return {
        "w1": jnp.asarray(w1, jnp.bfloat16),                    # [D, H] bf16
        "b1": jnp.asarray(b1, jnp.float32).reshape(1, H),
        "w2": jnp.asarray(w2, jnp.bfloat16),                    # [H, D] bf16
        "b2": jnp.asarray(b2, jnp.float32).reshape(1, D),
        "gamma": jnp.asarray(gamma, jnp.float32).reshape(1, D),
        "beta": jnp.asarray(beta, jnp.float32).reshape(1, D),
    }


def _pick_tm(m, max_tm=256):
    # Pad-aware: smallest sublane-aligned tile covering M in ceil(M/max_tm)
    # steps (M=384 -> 192, zero padded rows). Capped at 256: sweet spot for
    # the 2x256^2 MXU and VMEM budget (512 buys nothing per-step-overhead-wise
    # and collides with v7x's 64 MiB once weight tiles are resident).
    n_steps = pl.cdiv(m, max_tm)
    return max(8, pl.cdiv(pl.cdiv(m, n_steps), 8) * 8)


def _pick_th(h):
    for cand in (1024, 512, 256, 128):
        if h % cand == 0:
            return cand
    return h  # tiny / odd H: degenerate single k-step


def _vmem_cap_bytes():
    try:
        return int(pltpu.get_tpu_info().vmem_capacity_bytes)
    except Exception:
        return 64 * 2**20  # conservative (v7x) if query unavailable


def residual_forward(x, params, *, eps=1e-5, tm=None, th=None, streamed=None):
    """x: [M, D]; params from make_residual_params. Returns [M, D]."""
    M, D = x.shape
    w1, b1 = params["w1"], params["b1"]
    w2, b2 = params["w2"], params["b2"]
    gamma, beta = params["gamma"], params["beta"]
    H = w1.shape[1]

    tm = _pick_tm(M) if tm is None else max(8, (min(tm, 512) // 8) * 8)
    m_pad = pl.cdiv(M, tm) * tm
    # NOTE: when m_pad != M this pad materializes one extra copy of x in HBM;
    # _pick_tm keeps the padding to < 8 rows.
    x_in = x if m_pad == M else jnp.pad(x, ((0, m_pad - M), (0, 0)))

    itemsize = x.dtype.itemsize
    weight_bytes = 2 * D * H * 2  # both bf16 weights, single-buffered
    resident_est = (weight_bytes
                    + 2 * tm * D * itemsize * 2        # x + out, double-buffered
                    + tm * H * (4 + 2)                 # hidden f32 + bf16 copy
                    + 2 * tm * D * 4                   # x_tr / y f32 temps
                    + (H + 3 * D) * 4)                 # biases / LN params

    if streamed is None:
        vmem_cap = _vmem_cap_bytes()
        # Stream when resident weights don't fit this chip's VMEM comfortably
        # (always true at D=1792/H=4096 on v7x), or when M is small enough to
        # be weight-DMA bound (break-even ~0.5K rows on v5e, ~1-2K on v6e).
        streamed = (resident_est > int(0.7 * vmem_cap)) or \
                   (weight_bytes > 8 * 2**20 and M < 1024)

    n_m = m_pad // tm
    out_shape = jax.ShapeDtypeStruct((m_pad, D), x.dtype)

    if not streamed:
        kernel = functools.partial(_residual_resident_kernel, eps=eps)
        single = pl.Buffered(1)  # constant index_map -> 2nd buffer is pure waste
        grid_spec = pltpu.PrefetchScalarGridSpec(
            num_scalar_prefetch=0,
            grid=(n_m,),
            in_specs=[
                pl.BlockSpec((tm, D), lambda i: (i, 0)),                         # x tile
                pl.BlockSpec((D, H), lambda i: (0, 0), pipeline_mode=single),    # W1 (resident)
                pl.BlockSpec((1, H), lambda i: (0, 0), pipeline_mode=single),    # b1
                pl.BlockSpec((H, D), lambda i: (0, 0), pipeline_mode=single),    # W2 (resident)
                pl.BlockSpec((1, D), lambda i: (0, 0), pipeline_mode=single),    # b2
                pl.BlockSpec((1, D), lambda i: (0, 0), pipeline_mode=single),    # gamma
                pl.BlockSpec((1, D), lambda i: (0, 0), pipeline_mode=single),    # beta
            ],
            out_specs=pl.BlockSpec((tm, D), lambda i: (i, 0)),
        )
        dim_sem = ("parallel",)
        vmem_est = resident_est
    else:
        th_ = _pick_th(H) if th is None else th
        n_k = H // th_ if H % th_ == 0 else pl.cdiv(H, th_)
        assert H % th_ == 0, "streamed path requires th to divide H"
        kernel = functools.partial(_residual_streamed_kernel, eps=eps)
        single = pl.Buffered(1)
        grid_spec = pltpu.PrefetchScalarGridSpec(
            num_scalar_prefetch=0,
            grid=(n_m, n_k),
            in_specs=[
                pl.BlockSpec((tm, D), lambda i, k: (i, 0)),                       # x tile
                pl.BlockSpec((D, th_), lambda i, k: (0, k)),                      # W1 tile (streamed)
                pl.BlockSpec((1, th_), lambda i, k: (0, k)),                      # b1 tile
                pl.BlockSpec((th_, D), lambda i, k: (k, 0)),                      # W2 tile (streamed)
                pl.BlockSpec((1, D), lambda i, k: (0, 0), pipeline_mode=single),  # b2
                pl.BlockSpec((1, D), lambda i, k: (0, 0), pipeline_mode=single),  # gamma
                pl.BlockSpec((1, D), lambda i, k: (0, 0), pipeline_mode=single),  # beta
            ],
            out_specs=pl.BlockSpec((tm, D), lambda i, k: (i, 0)),
            scratch_shapes=[pltpu.VMEM((tm, D), jnp.float32)],                    # f32 accumulator
        )
        dim_sem = ("parallel", "arbitrary")
        vmem_est = (2 * 2 * (D * th_ + th_ * D) * 2      # W1/W2 tiles, bf16, double-buffered
                    + 2 * tm * D * itemsize * 2          # x + out, double-buffered
                    + tm * D * 4                         # accumulator scratch
                    + tm * th_ * (4 + 2)                 # hidden f32 + bf16
                    + tm * D * 4                         # y temp
                    + (th_ + 3 * D) * 4)

    vmem_limit = int(min(max(vmem_est * 1.25, 32 * 2**20), 100 * 2**20))

    out = pl.pallas_call(
        kernel,
        out_shape=out_shape,
        grid_spec=grid_spec,
        compiler_params=pltpu.CompilerParams(
            dimension_semantics=dim_sem,
            vmem_limit_bytes=vmem_limit),
    )(x_in, w1, b1, w2, b2, gamma, beta)

    return out if m_pad == M else out[:M]


# ----------------------------------------------------------------------------
# Reference & test
# ----------------------------------------------------------------------------

def _reference(x, w1, b1, w2, b2, gamma, beta, eps=1e-5):
    xf = x.astype(jnp.float32)
    h = jnp.maximum(xf @ w1.astype(jnp.float32) + b1, 0.0)
    x_tr = h @ w2.astype(jnp.float32) + b2
    y = xf + x_tr
    mean = jnp.mean(y, axis=-1, keepdims=True)
    var = jnp.mean((y - mean) ** 2, axis=-1, keepdims=True)
    return ((y - mean) * jax.lax.rsqrt(var + eps) * gamma + beta).astype(x.dtype)


if __name__ == "__main__":
    # Small shapes consistent with the module (dims -> D, hidden_dims -> H).
    # M=384 exercises the pad-aware tm selection (tm=192, zero padded rows).
    M, D, H = 384, 256, 512
    key = jax.random.PRNGKey(0)
    kx, k1, k2, k3, k4 = jax.random.split(key, 5)

    x = jax.random.normal(kx, (M, D), dtype=jnp.float32)
    w1 = jax.random.normal(k1, (D, H), dtype=jnp.float32) * (1.0 / D) ** 0.5
    b1 = jax.random.normal(k2, (H,), dtype=jnp.float32) * 0.01
    w2 = jax.random.normal(k3, (H, D), dtype=jnp.float32) * (1.0 / H) ** 0.5
    b2 = jax.random.normal(k4, (D,), dtype=jnp.float32) * 0.01
    gamma = jnp.ones((D,), dtype=jnp.float32)
    beta = jnp.zeros((D,), dtype=jnp.float32)

    # Parameters are cast/laid out once (hoisted out of the per-call path).
    params = make_residual_params(w1, b1, w2, b2, gamma, beta)
    ref = _reference(x, w1, b1, w2, b2, gamma, beta)

    # Default dispatch (resident weights at these small dims).
    out = jax.block_until_ready(residual_forward(x, params))
    assert out.shape == ref.shape, "shape mismatch vs reference"
    # bf16 MXU operands (f32 accumulation) -> loosened tolerance vs f32 ref.
    assert jnp.allclose(out, ref, atol=3e-2, rtol=3e-2), "resident mismatch"

    # Also exercise the H-tiled streaming path (the one used at the real dims
    # D=1792/H=4096 on v7x and whenever the kernel is weight-DMA bound).
    out_s = jax.block_until_ready(
        residual_forward(x, params, streamed=True, th=128))
    assert jnp.allclose(out_s, ref, atol=3e-2, rtol=3e-2), "streamed mismatch"

    print("KERNEL_OK")
</pallas_src>

<mosaic_0001>
module attributes {stable_mosaic.version = 11 : i64} {
  func.func @_residual_resident_kernel(%arg0: i32, %arg1: memref<192x256xf32, #tpu.memory_space<vmem>>, %arg2: memref<256x512xbf16, #tpu.memory_space<vmem>>, %arg3: memref<1x512xf32, #tpu.memory_space<vmem>>, %arg4: memref<512x256xbf16, #tpu.memory_space<vmem>>, %arg5: memref<1x256xf32, #tpu.memory_space<vmem>>, %arg6: memref<1x256xf32, #tpu.memory_space<vmem>>, %arg7: memref<1x256xf32, #tpu.memory_space<vmem>>, %arg8: memref<192x256xf32, #tpu.memory_space<vmem>>) attributes {dimension_semantics = [#tpu.dimension_semantics<parallel>], iteration_bounds = array<i64: 2>, scalar_prefetch = 0 : i64, scratch_operands = 0 : i64, tpu.core_type = #tpu.core_type<tc>, window_params = [{transform_indices = @transform_0, window_bounds = array<i64: 192, 256>}, {pipeline_mode = #tpu.pipeline_mode<synchronous>, transform_indices = @transform_1, window_bounds = array<i64: 256, 512>}, {pipeline_mode = #tpu.pipeline_mode<synchronous>, transform_indices = @transform_2, window_bounds = array<i64: 1, 512>}, {pipeline_mode = #tpu.pipeline_mode<synchronous>, transform_indices = @transform_3, window_bounds = array<i64: 512, 256>}, {pipeline_mode = #tpu.pipeline_mode<synchronous>, transform_indices = @transform_4, window_bounds = array<i64: 1, 256>}, {pipeline_mode = #tpu.pipeline_mode<synchronous>, transform_indices = @transform_5, window_bounds = array<i64: 1, 256>}, {pipeline_mode = #tpu.pipeline_mode<synchronous>, transform_indices = @transform_6, window_bounds = array<i64: 1, 256>}, {transform_indices = @transform_7, window_bounds = array<i64: 192, 256>}]} {
    %c0 = arith.constant 0 : index
    %c0_0 = arith.constant 0 : index
    %0 = vector.load %arg1[%c0, %c0_0] : memref<192x256xf32, #tpu.memory_space<vmem>>, vector<192x256xf32>
    %1 = arith.truncf %0 : vector<192x256xf32> to vector<192x256xbf16>
    %c0_1 = arith.constant 0 : index
    %c0_2 = arith.constant 0 : index
    %2 = vector.load %arg2[%c0_1, %c0_2] : memref<256x512xbf16, #tpu.memory_space<vmem>>, vector<256x512xbf16>
    %cst = arith.constant dense<0.000000e+00> : vector<192x512xf32>
    %3 = tpu.matmul %1, %2, %cst {dimension_numbers = #tpu.dot_dimension_numbers<[1], [0], [0], [1], [0, 0, 1, 1], [], []>} : vector<192x256xbf16>, vector<256x512xbf16>, vector<192x512xf32> -> vector<192x512xf32>
    %c0_3 = arith.constant 0 : index
    %c0_4 = arith.constant 0 : index
    %4 = vector.load %arg3[%c0_3, %c0_4] : memref<1x512xf32, #tpu.memory_space<vmem>>, vector<1x512xf32>
    %5 = vector.broadcast %4 : vector<1x512xf32> to vector<192x512xf32>
    %6 = arith.addf %3, %5 : vector<192x512xf32>
    %cst_5 = arith.constant 0.000000e+00 : f32
    %7 = vector.broadcast %cst_5 : f32 to vector<192x512xf32>
    %8 = arith.maximumf %6, %7 : vector<192x512xf32>
    %9 = arith.truncf %8 : vector<192x512xf32> to vector<192x512xbf16>
    %c0_6 = arith.constant 0 : index
    %c0_7 = arith.constant 0 : index
    %10 = vector.load %arg4[%c0_6, %c0_7] : memref<512x256xbf16, #tpu.memory_space<vmem>>, vector<512x256xbf16>
    %cst_8 = arith.constant dense<0.000000e+00> : vector<192x256xf32>
    %11 = tpu.matmul %9, %10, %cst_8 {dimension_numbers = #tpu.dot_dimension_numbers<[1], [0], [0], [1], [0, 0, 1, 1], [], []>} : vector<192x512xbf16>, vector<512x256xbf16>, vector<192x256xf32> -> vector<192x256xf32>
    %c0_9 = arith.constant 0 : index
    %c0_10 = arith.constant 0 : index
    %12 = vector.load %arg5[%c0_9, %c0_10] : memref<1x256xf32, #tpu.memory_space<vmem>>, vector<1x256xf32>
    %13 = vector.broadcast %12 : vector<1x256xf32> to vector<192x256xf32>
    %14 = arith.addf %11, %13 : vector<192x256xf32>
    %c0_11 = arith.constant 0 : index
    %c0_12 = arith.constant 0 : index
    %15 = vector.load %arg1[%c0_11, %c0_12] : memref<192x256xf32, #tpu.memory_space<vmem>>, vector<192x256xf32>
    %16 = arith.addf %15, %14 : vector<192x256xf32>
    %c0_13 = arith.constant 0 : index
    %c0_14 = arith.constant 0 : index
    %17 = vector.load %arg6[%c0_13, %c0_14] : memref<1x256xf32, #tpu.memory_space<vmem>>, vector<1x256xf32>
    %c0_15 = arith.constant 0 : index
    %c0_16 = arith.constant 0 : index
    %18 = vector.load %arg7[%c0_15, %c0_16] : memref<1x256xf32, #tpu.memory_space<vmem>>, vector<1x256xf32>
    %cst_17 = arith.constant dense<0.000000e+00> : vector<192xf32>
    %19 = vector.multi_reduction <add>, %16, %cst_17 [1] : vector<192x256xf32> to vector<192xf32>
    %20 = vector.shape_cast %19 : vector<192xf32> to vector<192x1xf32>
    %21 = arith.mulf %16, %16 : vector<192x256xf32>
    %cst_18 = arith.constant dense<0.000000e+00> : vector<192xf32>
    %22 = vector.multi_reduction <add>, %21, %cst_18 [1] : vector<192x256xf32> to vector<192xf32>
    %23 = vector.shape_cast %22 : vector<192xf32> to vector<192x1xf32>
    %cst_19 = arith.constant 3.906250e-03 : f32
    %24 = vector.broadcast %cst_19 : f32 to vector<192x1xf32>
    %25 = arith.mulf %20, %24 : vector<192x1xf32>
    %cst_20 = arith.constant 3.906250e-03 : f32
    %26 = vector.broadcast %cst_20 : f32 to vector<192x1xf32>
    %27 = arith.mulf %23, %26 : vector<192x1xf32>
    %28 = arith.mulf %25, %25 : vector<192x1xf32>
    %29 = arith.subf %27, %28 : vector<192x1xf32>
    %30 = vector.broadcast %25 : vector<192x1xf32> to vector<192x256xf32>
    %31 = arith.subf %16, %30 : vector<192x256xf32>
    %cst_21 = arith.constant 9.99999974E-6 : f32
    %32 = vector.broadcast %cst_21 : f32 to vector<192x1xf32>
    %33 = arith.addf %29, %32 : vector<192x1xf32>
    %34 = math.rsqrt %33 : vector<192x1xf32>
    %35 = vector.broadcast %34 : vector<192x1xf32> to vector<192x256xf32>
    %36 = arith.mulf %31, %35 : vector<192x256xf32>
    %37 = vector.broadcast %17 : vector<1x256xf32> to vector<192x256xf32>
    %38 = arith.mulf %36, %37 : vector<192x256xf32>
    %39 = vector.broadcast %18 : vector<1x256xf32> to vector<192x256xf32>
    %40 = arith.addf %38, %39 : vector<192x256xf32>
    %c0_22 = arith.constant 0 : index
    %c0_23 = arith.constant 0 : index
    %41 = vector.load %arg8[%c0_22, %c0_23] : memref<192x256xf32, #tpu.memory_space<vmem>>, vector<192x256xf32>
    tpu.vector_store %arg8[%c0_22, %c0_23], %40 {strides = array<i32>} : memref<192x256xf32, #tpu.memory_space<vmem>>, vector<192x256xf32>,
    return
  }
  func.func @transform_0(%arg0: i32) -> (i32, i32) {
    %c0_i32 = arith.constant 0 : i32
    %c0_i32_0 = arith.constant 0 : i32
    return %arg0, %c0_i32 : i32, i32
  }
  func.func @transform_1(%arg0: i32) -> (i32, i32) {
    %c0_i32 = arith.constant 0 : i32
    %c0_i32_0 = arith.constant 0 : i32
    %c0_i32_1 = arith.constant 0 : i32
    return %c0_i32, %c0_i32_0 : i32, i32
  }
  func.func @transform_2(%arg0: i32) -> (i32, i32) {
    %c0_i32 = arith.constant 0 : i32
    %c0_i32_0 = arith.constant 0 : i32
    %c0_i32_1 = arith.constant 0 : i32
    return %c0_i32, %c0_i32_0 : i32, i32
  }
  func.func @transform_3(%arg0: i32) -> (i32, i32) {
    %c0_i32 = arith.constant 0 : i32
    %c0_i32_0 = arith.constant 0 : i32
    %c0_i32_1 = arith.constant 0 : i32
    return %c0_i32, %c0_i32_0 : i32, i32
  }
  func.func @transform_4(%arg0: i32) -> (i32, i32) {
    %c0_i32 = arith.constant 0 : i32
    %c0_i32_0 = arith.constant 0 : i32
    %c0_i32_1 = arith.constant 0 : i32
    return %c0_i32, %c0_i32_0 : i32, i32
  }
  func.func @transform_5(%arg0: i32) -> (i32, i32) {
    %c0_i32 = arith.constant 0 : i32
    %c0_i32_0 = arith.constant 0 : i32
    %c0_i32_1 = arith.constant 0 : i32
    return %c0_i32, %c0_i32_0 : i32, i32
  }
  func.func @transform_6(%arg0: i32) -> (i32, i32) {
    %c0_i32 = arith.constant 0 : i32
    %c0_i32_0 = arith.constant 0 : i32
    %c0_i32_1 = arith.constant 0 : i32
    return %c0_i32, %c0_i32_0 : i32, i32
  }
  func.func @transform_7(%arg0: i32) -> (i32, i32) {
    %c0_i32 = arith.constant 0 : i32
    %c0_i32_0 = arith.constant 0 : i32
    return %arg0, %c0_i32 : i32, i32
  }
}

</mosaic_0001>

<llo_original>
// kernel: tpu_custom_call.1
$region0: #{tpu_custom_call.1}
  #allocation0 [shape = 'u32[]', space=smem, size = 0x4, offset = 0x4, fixed_abs, tag = 'smem constant byte address 0x4 - core index']
  #allocation1 [shape = 'u32[144,128]{1,0:T(1,128)}', space=vmem, size = 0x12000, scoped, tag = 'internal scratch']
  %s0 = inlined_call_operand.hbm [shape: f32[384,256], index: 0, kind: input, shape index: {}]
  %s1 = inlined_call_operand.hbm [shape: bf16[256,512], index: 1, kind: input, shape index: {}]
  %s2 = inlined_call_operand.hbm [shape: f32[1,512], index: 2, kind: input, shape index: {}]
  %s3 = inlined_call_operand.hbm [shape: bf16[512,256], index: 3, kind: input, shape index: {}]
  %s4 = inlined_call_operand.vmem [shape: f32[1,256], index: 4, kind: input, shape index: {}]
  %s5 = inlined_call_operand.vmem [shape: f32[1,256], index: 5, kind: input, shape index: {}]
  %s6 = inlined_call_operand.vmem [shape: f32[1,256], index: 6, kind: input, shape index: {}]
  %s7 = inlined_call_operand.hbm [shape: f32[384,256], index: 7, kind: output, shape index: {}]
  %s8 = sld [smem:[#allocation0]]
  $region77: #{tpu_custom_call.1} parent=0
    _
  %s10 = ssub.s32 1, %s8
  %s11 = scalar_select 0, %s10, %s8
  $region1: #{tpu_custom_call.1} parent=0
    #allocation2 [shape = 'u8[393216]{0}', space=vmem, size = 0x60000, scoped, tag = 'input window, operand 0']
    #allocation3 [shape = 's32[2]{0}', space=sflag, size = 0x8, scoped, tag = 'scoped memory for tpu_custom_call.1']
    #allocation4 [shape = 's32[2]{0}', space=sflag, size = 0x8, scoped, tag = 'scoped memory for tpu_custom_call.1']
    #allocation5 [shape = 'u8[262144]{0}', space=vmem, size = 0x40000, scoped, tag = 'input window, operand 1, single buffered']
    #allocation6 [shape = 's32[1]{0}', space=sflag, size = 0x4, scoped, tag = 'scoped memory for tpu_custom_call.1']
    #allocation7 [shape = 'u8[2048]{0}', space=vmem, size = 0x800, scoped, tag = 'input window, operand 2, single buffered']
    #allocation8 [shape = 'u8[262144]{0}', space=vmem, size = 0x40000, scoped, tag = 'input window, operand 3, single buffered']
    #allocation9 [shape = 's32[1]{0}', space=sflag, size = 0x4, scoped, tag = 'scoped memory for tpu_custom_call.1']
    #allocation10 [shape = 'u8[393216]{0}', space=vmem, size = 0x60000, scoped, tag = 'output window, operand 0']
    %12 = vsyncpa [#allocation3], 0
    %s13 = scalar_lea.sflag [#allocation3], 1
    %14 = vsyncpa %s13, 0
    %15 = vsyncpa [#allocation6], 0
    %16 = vsyncpa [#allocation9], 0
    %17 = vsyncpa [#allocation4], 0
    %s18 = scalar_lea.sflag [#allocation4], 1
    %19 = vsyncpa %s18, 0
    loop: start=0, step=1, limit=4
    $region2: #{tpu_custom_call.1} parent=1 // loop_pre_header
      _
    $region3: #{tpu_custom_call.1} parent=1 // loop_header
      %s21 = sphi 0, %s25
      %p22 = scmp.ge.s32.totalorder %s21, 4
      %s31 = sphi 0, %s33
      %s34 = sphi 0, %s31
      %s35 = sphi 0, %s34
      %s51 = sphi 0, %s35
      %s55 = sphi 0, %s55
      %s57 = sphi 0, %s55
      %s58 = sphi 0, %s57
      %s72 = sphi 0, %s58
      %s76 = sphi 0, %s76
      %s78 = sphi 0, %s76
      %s79 = sphi 0, %s78
      %s93 = sphi 0, %s79
      %s97 = sphi 0, %s97
      %s99 = sphi 0, %s97
      %s100 = sphi 0, %s99
      %s114 = sphi 0, %s100
      %s118 = sphi 0, %s118
      %s120 = sphi 0, %s118
      %s121 = sphi 0, %s120
      %s135 = sphi 0, %s121
      %s139 = sphi 0, %s139
      %s141 = sphi 0, %s139
      %s142 = sphi 0, %s141
      %s156 = sphi 0, %s142
      %s160 = sphi 0, %s160
      %s162 = sphi 0, %s160
      %s163 = sphi 0, %s162
      %s177 = sphi 0, %s163
      %s183 = sphi 0, %s185
      %s186 = sphi 0, %s183
      %s187 = sphi 0, %s186
      %s203 = sphi 0, %s187
    $region4: #{tpu_custom_call.1} parent=1 // loop_header_branch
      %24 = sbr.rel (%p22) target = $region8
    $region5: #{tpu_custom_call.1} parent=1 // loop_body
      %s26 = ssub.s32 %s21, 1
      %s27 = ssub.s32 %s21, 2
      %s28 = sadd.s32 %s21, 1
      %s29 = ssub.s32 %s21, %s28
      %p30 = scmp.eq.s32.totalorder %s29, 0
      %s32 = sadd.s32 %s31, 1
      %s33 = scalar_select %p30, %s31, %s32
      %p36 = pneg %p30
      %p37 = scmp.eq.s32.totalorder %s21, 1
      %p38 = por %p36, %p37
      %p39 = scmp.ne.s32.totalorder %s31, %s34
      %p40 = scmp.eq.s32.totalorder %s21, 0
      %p41 = por %p39, %p40
      %p42 = scmp.ne.s32.totalorder %s31, %s34
      %p43 = scmp.eq.s32.totalorder %s26, 1
      %p44 = por %p42, %p43
      %p45 = scmp.ne.s32.totalorder %s34, %s35
      %p46 = scmp.eq.s32.totalorder %s26, 0
      %p47 = por %p45, %p46
      %p48 = scmp.ne.s32.totalorder %s34, %s35
      %p49 = scmp.eq.s32.totalorder %s27, 1
      %p50 = por %p48, %p49
      %p52 = scmp.ne.s32.totalorder %s35, %s51
      %p53 = scmp.eq.s32.totalorder %s27, 0
      %p54 = por %p52, %p53
      %s56 = sadd.s32 %s55, 1
      %p59 = scmp.eq.s32.totalorder %s21, 1
      %p60 = scmp.ne.s32.totalorder %s55, %s57
      %p61 = scmp.eq.s32.totalorder %s21, 0
      %p62 = por %p60, %p61
      %p63 = scmp.ne.s32.totalorder %s55, %s57
      %p64 = scmp.eq.s32.totalorder %s26, 1
      %p65 = por %p63, %p64
      %p66 = scmp.ne.s32.totalorder %s57, %s58
      %p67 = scmp.eq.s32.totalorder %s26, 0
      %p68 = por %p66, %p67
      %p69 = scmp.ne.s32.totalorder %s57, %s58
      %p70 = scmp.eq.s32.totalorder %s27, 1
      %p71 = por %p69, %p70
      %p73 = scmp.ne.s32.totalorder %s58, %s72
      %p74 = scmp.eq.s32.totalorder %s27, 0
      %p75 = por %p73, %p74
      %s77 = sadd.s32 %s76, 1
      %p80 = scmp.eq.s32.totalorder %s21, 1
      %p81 = scmp.ne.s32.totalorder %s76, %s78
      %p82 = scmp.eq.s32.totalorder %s21, 0
      %p83 = por %p81, %p82
      %p84 = scmp.ne.s32.totalorder %s76, %s78
      %p85 = scmp.eq.s32.totalorder %s26, 1
      %p86 = por %p84, %p85
      %p87 = scmp.ne.s32.totalorder %s78, %s79
      %p88 = scmp.eq.s32.totalorder %s26, 0
      %p89 = por %p87, %p88
      %p90 = scmp.ne.s32.totalorder %s78, %s79
      %p91 = scmp.eq.s32.totalorder %s27, 1
      %p92 = por %p90, %p91
      %p94 = scmp.ne.s32.totalorder %s79, %s93
      %p95 = scmp.eq.s32.totalorder %s27, 0
      %p96 = por %p94, %p95
      %s98 = sadd.s32 %s97, 1
      %p101 = scmp.eq.s32.totalorder %s21, 1
      %p102 = scmp.ne.s32.totalorder %s97, %s99
      %p103 = scmp.eq.s32.totalorder %s21, 0
      %p104 = por %p102, %p103
      %p105 = scmp.ne.s32.totalorder %s97, %s99
      %p106 = scmp.eq.s32.totalorder %s26, 1
      %p107 = por %p105, %p106
      %p108 = scmp.ne.s32.totalorder %s99, %s100
      %p109 = scmp.eq.s32.totalorder %s26, 0
      %p110 = por %p108, %p109
      %p111 = scmp.ne.s32.totalorder %s99, %s100
      %p112 = scmp.eq.s32.totalorder %s27, 1
      %p113 = por %p111, %p112
      %p115 = scmp.ne.s32.totalorder %s100, %s114
      %p116 = scmp.eq.s32.totalorder %s27, 0
      %p117 = por %p115, %p116
      %s119 = sadd.s32 %s118, 1
      %p122 = scmp.eq.s32.totalorder %s21, 1
      %p123 = scmp.ne.s32.totalorder %s118, %s120
      %p124 = scmp.eq.s32.totalorder %s21, 0
      %p125 = por %p123, %p124
      %p126 = scmp.ne.s32.totalorder %s118, %s120
      %p127 = scmp.eq.s32.totalorder %s26, 1
      %p128 = por %p126, %p127
      %p129 = scmp.ne.s32.totalorder %s120, %s121
      %p130 = scmp.eq.s32.totalorder %s26, 0
      %p131 = por %p129, %p130
      %p132 = scmp.ne.s32.totalorder %s120, %s121
      %p133 = scmp.eq.s32.totalorder %s27, 1
      %p134 = por %p132, %p133
      %p136 = scmp.ne.s32.totalorder %s121, %s135
      %p137 = scmp.eq.s32.totalorder %s27, 0
      %p138 = por %p136, %p137
      %s140 = sadd.s32 %s139, 1
      %p143 = scmp.eq.s32.totalorder %s21, 1
      %p144 = scmp.ne.s32.totalorder %s139, %s141
      %p145 = scmp.eq.s32.totalorder %s21, 0
      %p146 = por %p144, %p145
      %p147 = scmp.ne.s32.totalorder %s139, %s141
      %p148 = scmp.eq.s32.totalorder %s26, 1
      %p149 = por %p147, %p148
      %p150 = scmp.ne.s32.totalorder %s141, %s142
      %p151 = scmp.eq.s32.totalorder %s26, 0
      %p152 = por %p150, %p151
      %p153 = scmp.ne.s32.totalorder %s141, %s142
      %p154 = scmp.eq.s32.totalorder %s27, 1
      %p155 = por %p153, %p154
      %p157 = scmp.ne.s32.totalorder %s142, %s156
      %p158 = scmp.eq.s32.totalorder %s27, 0
      %p159 = por %p157, %p158
      %s161 = sadd.s32 %s160, 1
      %p164 = scmp.eq.s32.totalorder %s21, 1
      %p165 = scmp.ne.s32.totalorder %s160, %s162
      %p166 = scmp.eq.s32.totalorder %s21, 0
      %p167 = por %p165, %p166
      %p168 = scmp.ne.s32.totalorder %s160, %s162
      %p169 = scmp.eq.s32.totalorder %s26, 1
      %p170 = por %p168, %p169
      %p171 = scmp.ne.s32.totalorder %s162, %s163
      %p172 = scmp.eq.s32.totalorder %s26, 0
      %p173 = por %p171, %p172
      %p174 = scmp.ne.s32.totalorder %s162, %s163
      %p175 = scmp.eq.s32.totalorder %s27, 1
      %p176 = por %p174, %p175
      %p178 = scmp.ne.s32.totalorder %s163, %s177
      %p179 = scmp.eq.s32.totalorder %s27, 0
      %p180 = por %p178, %p179
      %s181 = ssub.s32 %s21, %s28
      %p182 = scmp.eq.s32.totalorder %s181, 0
      %s184 = sadd.s32 %s183, 1
      %s185 = scalar_select %p182, %s183, %s184
      %p188 = pneg %p182
      %p189 = scmp.eq.s32.totalorder %s21, 1
      %p190 = por %p188, %p189
      %p191 = scmp.ne.s32.totalorder %s183, %s186
      %p192 = scmp.eq.s32.totalorder %s21, 0
      %p193 = por %p191, %p192
      %p194 = scmp.ne.s32.totalorder %s183, %s186
      %p195 = scmp.eq.s32.totalorder %s26, 1
      %p196 = por %p194, %p195
      %p197 = scmp.ne.s32.totalorder %s186, %s187
      %p198 = scmp.eq.s32.totalorder %s26, 0
      %p199 = por %p197, %p198
      %p200 = scmp.ne.s32.totalorder %s186, %s187
      %p201 = scmp.eq.s32.totalorder %s27, 1
      %p202 = por %p200, %p201
      %p204 = scmp.ne.s32.totalorder %s187, %s203
      %p205 = scmp.eq.s32.totalorder %s27, 0
      %p206 = por %p204, %p205
      %p207 = scmp.le.s32.totalorder 1, %s21
      %p208 = scmp.lt.s32.totalorder %s21, 3
      %p209 = pnand %p207, %p208
      %p210 = pneg %p209
      // Predicated region
      $region9: #{tpu_custom_call.1} parent=5 // pred_check
        _
      $region10: #{tpu_custom_call.1} parent=5 // pred_check_branch
        %212 = sbr.rel (%p209) target = $region12
      $region11: #{tpu_custom_call.1} parent=5 // pred_region
        %s213 = ssub.s32 %s21, 1
        // Predicated region
        $region13: #{tpu_custom_call.1} parent=11 // pred_check
          %p214 = pneg %p68
        $region14: #{tpu_custom_call.1} parent=11 // pred_check_branch
          %216 = sbr.rel (%p214) target = $region16
        $region15: #{tpu_custom_call.1} parent=11 // pred_region
          %s218 = ssub.s32 8192, 8192
          %219 = vsyncadd [#allocation6], %s218
          %s220 = sshll.u32 [#allocation5], 4
          %s221 = int_to_ptr.vmem [resolvable:$true] %s220
          %226 = dma.hbm_to_vmem [thread:$0]  %s1, 8192, %s221, [#allocation6], 256, 256, 16
        $region16: #{tpu_custom_call.1} parent=11 // pred_fallthru
          _
        // Predicated region
        $region17: #{tpu_custom_call.1} parent=11 // pred_check
          %p227 = pneg %p89
        $region18: #{tpu_custom_call.1} parent=11 // pred_check_branch
          %229 = sbr.rel (%p227) target = $region20
        $region19: #{tpu_custom_call.1} parent=11 // pred_region
          %s231 = ssub.s32 64, 64
          %232 = vsyncadd [#allocation6], %s231
          %s234 = sshll.u32 [#allocation7], 4
          %s235 = int_to_ptr.vmem [resolvable:$true] %s234
          %237 = dma.hbm_to_vmem [thread:$0]  %s2, 64, %s235, [#allocation6]
        $region20: #{tpu_custom_call.1} parent=11 // pred_fallthru
          _
        // Predicated region
        $region21: #{tpu_custom_call.1} parent=11 // pred_check
          %p238 = pneg %p110
        $region22: #{tpu_custom_call.1} parent=11 // pred_check_branch
          %240 = sbr.rel (%p238) target = $region24
        $region23: #{tpu_custom_call.1} parent=11 // pred_region
          %s242 = ssub.s32 8192, 8192
          %243 = vsyncadd [#allocation9], %s242
          %s244 = sshll.u32 [#allocation8], 4
          %s245 = int_to_ptr.vmem [resolvable:$true] %s244
          %250 = dma.hbm_to_vmem [thread:$0]  %s3, 8192, %s245, [#allocation9], 128, 128, 8
        $region24: #{tpu_custom_call.1} parent=11 // pred_fallthru
          _
        // Predicated region
        $region25: #{tpu_custom_call.1} parent=11 // pred_check
          %p251 = pneg %p131
        $region26: #{tpu_custom_call.1} parent=11 // pred_check_branch
          %253 = sbr.rel (%p251) target = $region28
        $region27: #{tpu_custom_call.1} parent=11 // pred_region
          _
        $region28: #{tpu_custom_call.1} parent=11 // pred_fallthru
          _
        // Predicated region
        $region29: #{tpu_custom_call.1} parent=11 // pred_check
          %p254 = pneg %p152
        $region30: #{tpu_custom_call.1} parent=11 // pred_check_branch
          %256 = sbr.rel (%p254) target = $region32
        $region31: #{tpu_custom_call.1} parent=11 // pred_region
          _
        $region32: #{tpu_custom_call.1} parent=11 // pred_fallthru
          _
        // Predicated region
        $region33: #{tpu_custom_call.1} parent=11 // pred_check
          %p257 = pneg %p173
        $region34: #{tpu_custom_call.1} parent=11 // pred_check_branch
          %259 = sbr.rel (%p257) target = $region36
        $region35: #{tpu_custom_call.1} parent=11 // pred_region
          _
        $region36: #{tpu_custom_call.1} parent=11 // pred_fallthru
          _
      $region12: #{tpu_custom_call.1} parent=5 // pred_fallthru
        _
      %p260 = scmp.lt.s32.totalorder %s21, 2
      // Predicated region
      $region37: #{tpu_custom_call.1} parent=5 // pred_check
        %p261 = pneg %p260
      $region38: #{tpu_custom_call.1} parent=5 // pred_check_branch
        %263 = sbr.rel (%p261) target = $region40
      $region39: #{tpu_custom_call.1} parent=5 // pred_region
        // Predicated region
        $region41: #{tpu_custom_call.1} parent=39 // pred_check
          %p264 = pneg %p41
        $region42: #{tpu_custom_call.1} parent=39 // pred_check_branch
          %266 = sbr.rel (%p264) target = $region44
        $region43: #{tpu_custom_call.1} parent=39 // pred_region
          %s267 = sand.u32 %s31, 1
          %s268 = scalar_lea.sflag [#allocation3], %s267
          %s269 = sand.u32 %s31, 1
          %s270 = smul.addr %s269, 384
          %s271 = scalar_lea.vmem [#allocation2], %s270
          %s272 = smul.u32 24, %s21
          %s274 = ssub.s32 6144, 6144
          %275 = vsyncadd %s268, %s274
          %s276 = smul.addr %s272, 2
          %s277 = smul.addr %s276, 128
          %s278 = scalar_lea.hbm %s0, %s277
          %s279 = sshll.u32 %s271, 4
          %s280 = int_to_ptr.vmem [resolvable:$true] %s279
          %285 = dma.hbm_to_vmem [thread:$0]  %s278, 6144, %s280, %s268, 256, 256, 16
        $region44: #{tpu_custom_call.1} parent=39 // pred_fallthru
          _
      $region40: #{tpu_custom_call.1} parent=5 // pred_fallthru
        _
      %p286 = scmp.le.s32.totalorder 1, %s21
      %p287 = scmp.lt.s32.totalorder %s21, 3
      %p288 = pnand %p286, %p287
      %p289 = pneg %p288
      // Predicated region
      $region45: #{tpu_custom_call.1} parent=5 // pred_check
        _
      $region46: #{tpu_custom_call.1} parent=5 // pred_check_branch
        %291 = sbr.rel (%p288) target = $region48
      $region47: #{tpu_custom_call.1} parent=5 // pred_region
        %s292 = ssub.s32 %s21, 1
        %s293 = sand.u32 %s34, 1
        %s294 = scalar_lea.sflag [#allocation3], %s293
        %s295 = sand.u32 %s34, 1
        %s296 = smul.addr %s295, 384
        %s297 = scalar_lea.vmem [#allocation2], %s296
        // Predicated region
        $region49: #{tpu_custom_call.1} parent=47 // pred_check
          %p298 = pneg %p47
        $region50: #{tpu_custom_call.1} parent=47 // pred_check_branch
          %300 = sbr.rel (%p298) target = $region52
        $region51: #{tpu_custom_call.1} parent=47 // pred_region
          %301 = dma.done %s294, 6144
        $region52: #{tpu_custom_call.1} parent=47 // pred_fallthru
          _
        // Predicated region
        $region53: #{tpu_custom_call.1} parent=47 // pred_check
          %p302 = pneg %p68
        $region54: #{tpu_custom_call.1} parent=47 // pred_check_branch
          %304 = sbr.rel (%p302) target = $region56
        $region55: #{tpu_custom_call.1} parent=47 // pred_region
          %305 = dma.done [#allocation6], 8192
        $region56: #{tpu_custom_call.1} parent=47 // pred_fallthru
          _
        // Predicated region
        $region57: #{tpu_custom_call.1} parent=47 // pred_check
          %p306 = pneg %p89
        $region58: #{tpu_custom_call.1} parent=47 // pred_check_branch
          %308 = sbr.rel (%p306) target = $region60
        $region59: #{tpu_custom_call.1} parent=47 // pred_region
          %309 = dma.done [#allocation6], 64
        $region60: #{tpu_custom_call.1} parent=47 // pred_fallthru
          _
        // Predicated region
        $region61: #{tpu_custom_call.1} parent=47 // pred_check
          %p310 = pneg %p110
        $region62: #{tpu_custom_call.1} parent=47 // pred_check_branch
          %312 = sbr.rel (%p310) target = $region64
        $region63: #{tpu_custom_call.1} parent=47 // pred_region
          %313 = dma.done [#allocation9], 8192
        $region64: #{tpu_custom_call.1} parent=47 // pred_fallthru
          _
        %s314 = sand.u32 %s34, 1
        %s315 = scalar_lea.sflag [#allocation3], %s314
        %s316 = sand.u32 %s34, 1
        %s317 = smul.addr %s316, 384
        %s318 = scalar_lea.vmem [#allocation2], %s317
        %p319 = pneg %p47
        %p320 = pneg %p44
        %p321 = pneg %p68
        %p322 = pneg %p65
        %p323 = pneg %p89
        %p324 = pneg %p86
        %p325 = pneg %p110
        %p326 = pneg %p107
        %p327 = pneg %p131
        %p328 = pneg %p128
        %p329 = pneg %p152
        %p330 = pneg %p149
        %p331 = pneg %p173
        %p332 = pneg %p170
        %p333 = pneg %p199
        %p334 = pneg %p196
        %s335 = sand.u32 %s186, 1
        %s336 = scalar_lea.sflag [#allocation4], %s335
        %s337 = sand.u32 %s186, 1
        %s338 = smul.addr %s337, 384
        %s339 = scalar_lea.vmem [#allocation10], %s338
        %s340 = smul.u32 24, %s26
        %s341 = smul.u32 24, %s26
        %v342 = vld [vmem:[%s297] sm:$0xff]
        %v343 = vld [vmem:[%s297 + $0x8] sm:$0xff]
        %v344 = vld [vmem:[%s297 + $0x10] sm:$0xff]
        %v345 = vld [vmem:[%s297 + $0x18] sm:$0xff]
        %v346 = vld [vmem:[%s297 + $0x20] sm:$0xff]
        %v347 = vld [vmem:[%s297 + $0x28] sm:$0xff]
        %v348 = vld [vmem:[%s297 + $0x30] sm:$0xff]
        %v349 = vld [vmem:[%s297 + $0x38] sm:$0xff]
        %v350 = vld [vmem:[%s297 + $0x40] sm:$0xff]
        %v351 = vld [vmem:[%s297 + $0x48] sm:$0xff]
        %v352 = vld [vmem:[%s297 + $0x50] sm:$0xff]
        %v353 = vld [vmem:[%s297 + $0x58] sm:$0xff]
        %v354 = vld [vmem:[%s297 + $0x60] sm:$0xff]
        %v355 = vld [vmem:[%s297 + $0x68] sm:$0xff]
        %v356 = vld [vmem:[%s297 + $0x70] sm:$0xff]
        %v357 = vld [vmem:[%s297 + $0x78] sm:$0xff]
        %v358 = vld [vmem:[%s297 + $0x80] sm:$0xff]
        %v359 = vld [vmem:[%s297 + $0x88] sm:$0xff]
        %v360 = vld [vmem:[%s297 + $0x90] sm:$0xff]
        %v361 = vld [vmem:[%s297 + $0x98] sm:$0xff]
        %v362 = vld [vmem:[%s297 + $0xa0] sm:$0xff]
        %v363 = vld [vmem:[%s297 + $0xa8] sm:$0xff]
        %v364 = vld [vmem:[%s297 + $0xb0] sm:$0xff]
        %v365 = vld [vmem:[%s297 + $0xb8] sm:$0xff]
        %v366 = vld [vmem:[%s297 + $0xc0] sm:$0xff]
        %v367 = vld [vmem:[%s297 + $0xc8] sm:$0xff]
        %v368 = vld [vmem:[%s297 + $0xd0] sm:$0xff]
        %v369 = vld [vmem:[%s297 + $0xd8] sm:$0xff]
        %v370 = vld [vmem:[%s297 + $0xe0] sm:$0xff]
        %v371 = vld [vmem:[%s297 + $0xe8] sm:$0xff]
        %v372 = vld [vmem:[%s297 + $0xf0] sm:$0xff]
        %v373 = vld [vmem:[%s297 + $0xf8] sm:$0xff]
        %v374 = vld [vmem:[%s297 + $0x100] sm:$0xff]
        %v375 = vld [vmem:[%s297 + $0x108] sm:$0xff]
        %v376 = vld [vmem:[%s297 + $0x110] sm:$0xff]
        %v377 = vld [vmem:[%s297 + $0x118] sm:$0xff]
        %v378 = vld [vmem:[%s297 + $0x120] sm:$0xff]
        %v379 = vld [vmem:[%s297 + $0x128] sm:$0xff]
        %v380 = vld [vmem:[%s297 + $0x130] sm:$0xff]
        %v381 = vld [vmem:[%s297 + $0x138] sm:$0xff]
        %v382 = vld [vmem:[%s297 + $0x140] sm:$0xff]
        %v383 = vld [vmem:[%s297 + $0x148] sm:$0xff]
        %v384 = vld [vmem:[%s297 + $0x150] sm:$0xff]
        %v385 = vld [vmem:[%s297 + $0x158] sm:$0xff]
        %v386 = vld [vmem:[%s297 + $0x160] sm:$0xff]
        %v387 = vld [vmem:[%s297 + $0x168] sm:$0xff]
        %v388 = vld [vmem:[%s297 + $0x170] sm:$0xff]
        %v389 = vld [vmem:[%s297 + $0x178] sm:$0xff]
        %v390 = vpack.c.bf16 %v344, %v342
        %v391 = vpack.c.bf16 %v345, %v343
        %v392 = vpack.c.bf16 %v348, %v346
        %v393 = vpack.c.bf16 %v349, %v347
        %v394 = vpack.c.bf16 %v352, %v350
        %v395 = vpack.c.bf16 %v353, %v351
        %v396 = vpack.c.bf16 %v356, %v354
        %v397 = vpack.c.bf16 %v357, %v355
        %v398 = vpack.c.bf16 %v360, %v358
        %v399 = vpack.c.bf16 %v361, %v359
        %v400 = vpack.c.bf16 %v364, %v362
        %v401 = vpack.c.bf16 %v365, %v363
        %v402 = vpack.c.bf16 %v368, %v366
        %v403 = vpack.c.bf16 %v369, %v367
        %v404 = vpack.c.bf16 %v372, %v370
        %v405 = vpack.c.bf16 %v373, %v371
        %v406 = vpack.c.bf16 %v376, %v374
        %v407 = vpack.c.bf16 %v377, %v375
        %v408 = vpack.c.bf16 %v380, %v378
        %v409 = vpack.c.bf16 %v381, %v379
        %v410 = vpack.c.bf16 %v384, %v382
        %v411 = vpack.c.bf16 %v385, %v383
        %v412 = vpack.c.bf16 %v388, %v386
        %v413 = vpack.c.bf16 %v389, %v387
        %v414 = vld [vmem:[#allocation5] sm:$0xff]
        %v415 = vld [vmem:[#allocation5 + $0x8] sm:$0xff]
        %v416 = vld [vmem:[#allocation5 + $0x10] sm:$0xff]
        %v417 = vld [vmem:[#allocation5 + $0x18] sm:$0xff]
        %v418 = vld [vmem:[#allocation5 + $0x20] sm:$0xff]
        %v419 = vld [vmem:[#allocation5 + $0x28] sm:$0xff]
        %v420 = vld [vmem:[#allocation5 + $0x30] sm:$0xff]
        %v421 = vld [vmem:[#allocation5 + $0x38] sm:$0xff]
        %v422 = vld [vmem:[#allocation5 + $0x40] sm:$0xff]
        %v423 = vld [vmem:[#allocation5 + $0x48] sm:$0xff]
        %v424 = vld [vmem:[#allocation5 + $0x50] sm:$0xff]
        %v425 = vld [vmem:[#allocation5 + $0x58] sm:$0xff]
        %v426 = vld [vmem:[#allocation5 + $0x60] sm:$0xff]
        %v427 = vld [vmem:[#allocation5 + $0x68] sm:$0xff]
        %v428 = vld [vmem:[#allocation5 + $0x70] sm:$0xff]
        %v429 = vld [vmem:[#allocation5 + $0x78] sm:$0xff]
        %v430 = vld [vmem:[#allocation5 + $0x80] sm:$0xff]
        %v431 = vld [vmem:[#allocation5 + $0x88] sm:$0xff]
        %v432 = vld [vmem:[#allocation5 + $0x90] sm:$0xff]
        %v433 = vld [vmem:[#allocation5 + $0x98] sm:$0xff]
        %v434 = vld [vmem:[#allocation5 + $0xa0] sm:$0xff]
        %v435 = vld [vmem:[#allocation5 + $0xa8] sm:$0xff]
        %v436 = vld [vmem:[#allocation5 + $0xb0] sm:$0xff]
        %v437 = vld [vmem:[#allocation5 + $0xb8] sm:$0xff]
        %v438 = vld [vmem:[#allocation5 + $0xc0] sm:$0xff]
        %v439 = vld [vmem:[#allocation5 + $0xc8] sm:$0xff]
        %v440 = vld [vmem:[#allocation5 + $0xd0] sm:$0xff]
        %v441 = vld [vmem:[#allocation5 + $0xd8] sm:$0xff]
        %v442 = vld [vmem:[#allocation5 + $0xe0] sm:$0xff]
        %v443 = vld [vmem:[#allocation5 + $0xe8] sm:$0xff]
        %v444 = vld [vmem:[#allocation5 + $0xf0] sm:$0xff]
        %v445 = vld [vmem:[#allocation5 + $0xf8] sm:$0xff]
        %v446 = vld [vmem:[#allocation5 + $0x100] sm:$0xff]
        %v447 = vld [vmem:[#allocation5 + $0x108] sm:$0xff]
        %v448 = vld [vmem:[#allocation5 + $0x110] sm:$0xff]
        %v449 = vld [vmem:[#allocation5 + $0x118] sm:$0xff]
        %v450 = vld [vmem:[#allocation5 + $0x120] sm:$0xff]
        %v451 = vld [vmem:[#allocation5 + $0x128] sm:$0xff]
        %v452 = vld [vmem:[#allocation5 + $0x130] sm:$0xff]
        %v453 = vld [vmem:[#allocation5 + $0x138] sm:$0xff]
        %v454 = vld [vmem:[#allocation5 + $0x140] sm:$0xff]
        %v455 = vld [vmem:[#allocation5 + $0x148] sm:$0xff]
        %v456 = vld [vmem:[#allocation5 + $0x150] sm:$0xff]
        %v457 = vld [vmem:[#allocation5 + $0x158] sm:$0xff]
        %v458 = vld [vmem:[#allocation5 + $0x160] sm:$0xff]
        %v459 = vld [vmem:[#allocation5 + $0x168] sm:$0xff]
        %v460 = vld [vmem:[#allocation5 + $0x170] sm:$0xff]
        %v461 = vld [vmem:[#allocation5 + $0x178] sm:$0xff]
        %v462 = vld [vmem:[#allocation5 + $0x180] sm:$0xff]
        %v463 = vld [vmem:[#allocation5 + $0x188] sm:$0xff]
        %v464 = vld [vmem:[#allocation5 + $0x190] sm:$0xff]
        %v465 = vld [vmem:[#allocation5 + $0x198] sm:$0xff]
        %v466 = vld [vmem:[#allocation5 + $0x1a0] sm:$0xff]
        %v467 = vld [vmem:[#allocation5 + $0x1a8] sm:$0xff]
        %v468 = vld [vmem:[#allocation5 + $0x1b0] sm:$0xff]
        %v469 = vld [vmem:[#allocation5 + $0x1b8] sm:$0xff]
        %v470 = vld [vmem:[#allocation5 + $0x1c0] sm:$0xff]
        %v471 = vld [vmem:[#allocation5 + $0x1c8] sm:$0xff]
        %v472 = vld [vmem:[#allocation5 + $0x1d0] sm:$0xff]
        %v473 = vld [vmem:[#allocation5 + $0x1d8] sm:$0xff]
        %v474 = vld [vmem:[#allocation5 + $0x1e0] sm:$0xff]
        %v475 = vld [vmem:[#allocation5 + $0x1e8] sm:$0xff]
        %v476 = vld [vmem:[#allocation5 + $0x1f0] sm:$0xff]
        %v477 = vld [vmem:[#allocation5 + $0x1f8] sm:$0xff]
        %v478 = vld [vmem:[#allocation7] sm:$0xf]
        %v480 = vlaneseq
        %v481 = vshrl.u32 %v480, 7
        %v482 = vsub.s32 0, %v481
        %v483 = vrot.slane %v478, %v482
        %v484 = vlaneseq
        %v485 = vshrl.u32 %v484, 7
        %v486 = vsub.s32 1, %v485
        %v487 = vrot.slane %v478, %v486
        %v488 = vlaneseq
        %v489 = vshrl.u32 %v488, 7
        %v490 = vsub.s32 2, %v489
        %v491 = vrot.slane %v478, %v490
        %v492 = vlaneseq
        %v493 = vshrl.u32 %v492, 7
        %v494 = vsub.s32 3, %v493
        %v495 = vrot.slane %v478, %v494
        %v564 = vunpack.c.l.b16 %v414
        %v565 = vunpack.c.h.b16 %v414
        %v566 = vunpack.c.l.b16 %v415
        %v567 = vunpack.c.h.b16 %v415
        %v568 = vunpack.c.l.b16 %v416
        %v569 = vunpack.c.h.b16 %v416
        %v570 = vunpack.c.l.b16 %v417
        %v571 = vunpack.c.h.b16 %v417
        %v572 = vunpack.c.l.b16 %v418
        %v573 = vunpack.c.h.b16 %v418
        %v574 = vunpack.c.l.b16 %v419
        %v575 = vunpack.c.h.b16 %v419
        %v576 = vunpack.c.l.b16 %v420
        %v577 = vunpack.c.h.b16 %v420
        %v578 = vunpack.c.l.b16 %v421
        %v579 = vunpack.c.h.b16 %v421
        %v580 = vunpack.c.l.b16 %v422
        %v581 = vunpack.c.h.b16 %v422
        %v582 = vunpack.c.l.b16 %v423
        %v583 = vunpack.c.h.b16 %v423
        %v584 = vunpack.c.l.b16 %v424
        %v585 = vunpack.c.h.b16 %v424
        %v586 = vunpack.c.l.b16 %v425
        %v587 = vunpack.c.h.b16 %v425
        %v588 = vunpack.c.l.b16 %v426
        %v589 = vunpack.c.h.b16 %v426
        %v590 = vunpack.c.l.b16 %v427
        %v591 = vunpack.c.h.b16 %v427
        %v592 = vunpack.c.l.b16 %v428
        %v593 = vunpack.c.h.b16 %v428
        %v594 = vunpack.c.l.b16 %v429
        %v595 = vunpack.c.h.b16 %v429
        %v596 = vunpack.c.l.b16 %v430
        %v597 = vunpack.c.h.b16 %v430
        %v598 = vunpack.c.l.b16 %v431
        %v599 = vunpack.c.h.b16 %v431
        %v600 = vunpack.c.l.b16 %v432
        %v601 = vunpack.c.h.b16 %v432
        %v602 = vunpack.c.l.b16 %v433
        %v603 = vunpack.c.h.b16 %v433
        %v604 = vunpack.c.l.b16 %v434
        %v605 = vunpack.c.h.b16 %v434
        %v606 = vunpack.c.l.b16 %v435
        %v607 = vunpack.c.h.b16 %v435
        %v608 = vunpack.c.l.b16 %v436
        %v609 = vunpack.c.h.b16 %v436
        %v610 = vunpack.c.l.b16 %v437
        %v611 = vunpack.c.h.b16 %v437
        %v612 = vunpack.c.l.b16 %v438
        %v613 = vunpack.c.h.b16 %v438
        %v614 = vunpack.c.l.b16 %v439
        %v615 = vunpack.c.h.b16 %v439
        %v616 = vunpack.c.l.b16 %v440
        %v617 = vunpack.c.h.b16 %v440
        %v618 = vunpack.c.l.b16 %v441
        %v619 = vunpack.c.h.b16 %v441
        %v620 = vunpack.c.l.b16 %v442
        %v621 = vunpack.c.h.b16 %v442
        %v622 = vunpack.c.l.b16 %v443
        %v623 = vunpack.c.h.b16 %v443
        %v624 = vunpack.c.l.b16 %v444
        %v625 = vunpack.c.h.b16 %v444
        %v626 = vunpack.c.l.b16 %v445
        %v627 = vunpack.c.h.b16 %v445
        %v628 = vunpack.c.l.b16 %v446
        %v629 = vunpack.c.h.b16 %v446
        %v630 = vunpack.c.l.b16 %v447
        %v631 = vunpack.c.h.b16 %v447
        %v632 = vunpack.c.l.b16 %v448
        %v633 = vunpack.c.h.b16 %v448
        %v634 = vunpack.c.l.b16 %v449
        %v635 = vunpack.c.h.b16 %v449
        %v636 = vunpack.c.l.b16 %v450
        %v637 = vunpack.c.h.b16 %v450
        %v638 = vunpack.c.l.b16 %v451
        %v639 = vunpack.c.h.b16 %v451
        %v640 = vunpack.c.l.b16 %v452
        %v641 = vunpack.c.h.b16 %v452
        %v642 = vunpack.c.l.b16 %v453
        %v643 = vunpack.c.h.b16 %v453
        %v644 = vunpack.c.l.b16 %v454
        %v645 = vunpack.c.h.b16 %v454
        %v646 = vunpack.c.l.b16 %v455
        %v647 = vunpack.c.h.b16 %v455
        %v648 = vunpack.c.l.b16 %v456
        %v649 = vunpack.c.h.b16 %v456
        %v650 = vunpack.c.l.b16 %v457
        %v651 = vunpack.c.h.b16 %v457
        %v652 = vunpack.c.l.b16 %v458
        %v653 = vunpack.c.h.b16 %v458
        %v654 = vunpack.c.l.b16 %v459
        %v655 = vunpack.c.h.b16 %v459
        %v656 = vunpack.c.l.b16 %v460
        %v657 = vunpack.c.h.b16 %v460
        %v658 = vunpack.c.l.b16 %v461
        %v659 = vunpack.c.h.b16 %v461
        %v660 = vunpack.c.l.b16 %v462
        %v661 = vunpack.c.h.b16 %v462
        %v662 = vunpack.c.l.b16 %v463
        %v663 = vunpack.c.h.b16 %v463
        %v664 = vunpack.c.l.b16 %v464
        %v665 = vunpack.c.h.b16 %v464
        %v666 = vunpack.c.l.b16 %v465
        %v667 = vunpack.c.h.b16 %v465
        %v668 = vunpack.c.l.b16 %v466
        %v669 = vunpack.c.h.b16 %v466
        %v670 = vunpack.c.l.b16 %v467
        %v671 = vunpack.c.h.b16 %v467
        %v672 = vunpack.c.l.b16 %v468
        %v673 = vunpack.c.h.b16 %v468
        %v674 = vunpack.c.l.b16 %v469
        %v675 = vunpack.c.h.b16 %v469
        %v676 = vunpack.c.l.b16 %v470
        %v677 = vunpack.c.h.b16 %v470
        %v678 = vunpack.c.l.b16 %v471
        %v679 = vunpack.c.h.b16 %v471
        %v680 = vunpack.c.l.b16 %v472
        %v681 = vunpack.c.h.b16 %v472
        %v682 = vunpack.c.l.b16 %v473
        %v683 = vunpack.c.h.b16 %v473
        %v684 = vunpack.c.l.b16 %v474
        %v685 = vunpack.c.h.b16 %v474
        %v686 = vunpack.c.l.b16 %v475
        %v687 = vunpack.c.h.b16 %v475
        %v688 = vunpack.c.l.b16 %v476
        %v689 = vunpack.c.h.b16 %v476
        %v690 = vunpack.c.l.b16 %v477
        %v691 = vunpack.c.h.b16 %v477
        %v692 = vpack.c.b16 %v568, %v564
        %v693 = vpack.c.b16 %v569, %v565
        %v694 = vpack.c.b16 %v570, %v566
        %v695 = vpack.c.b16 %v571, %v567
        %v696 = vpack.c.b16 %v576, %v572
        %v697 = vpack.c.b16 %v577, %v573
        %v698 = vpack.c.b16 %v578, %v574
        %v699 = vpack.c.b16 %v579, %v575
        %v700 = vpack.c.b16 %v584, %v580
        %v701 = vpack.c.b16 %v585, %v581
        %v702 = vpack.c.b16 %v586, %v582
        %v703 = vpack.c.b16 %v587, %v583
        %v704 = vpack.c.b16 %v592, %v588
        %v705 = vpack.c.b16 %v593, %v589
        %v706 = vpack.c.b16 %v594, %v590
        %v707 = vpack.c.b16 %v595, %v591
        %v708 = vpack.c.b16 %v600, %v596
        %v709 = vpack.c.b16 %v601, %v597
        %v710 = vpack.c.b16 %v602, %v598
        %v711 = vpack.c.b16 %v603, %v599
        %v712 = vpack.c.b16 %v608, %v604
        %v713 = vpack.c.b16 %v609, %v605
        %v714 = vpack.c.b16 %v610, %v606
        %v715 = vpack.c.b16 %v611, %v607
        %v716 = vpack.c.b16 %v616, %v612
        %v717 = vpack.c.b16 %v617, %v613
        %v718 = vpack.c.b16 %v618, %v614
        %v719 = vpack.c.b16 %v619, %v615
        %v720 = vpack.c.b16 %v624, %v620
        %v721 = vpack.c.b16 %v625, %v621
        %v722 = vpack.c.b16 %v626, %v622
        %v723 = vpack.c.b16 %v627, %v623
        %v724 = vpack.c.b16 %v632, %v628
        %v725 = vpack.c.b16 %v633, %v629
        %v726 = vpack.c.b16 %v634, %v630
        %v727 = vpack.c.b16 %v635, %v631
        %v728 = vpack.c.b16 %v640, %v636
        %v729 = vpack.c.b16 %v641, %v637
        %v730 = vpack.c.b16 %v642, %v638
        %v731 = vpack.c.b16 %v643, %v639
        %v732 = vpack.c.b16 %v648, %v644
        %v733 = vpack.c.b16 %v649, %v645
        %v734 = vpack.c.b16 %v650, %v646
        %v735 = vpack.c.b16 %v651, %v647
        %v736 = vpack.c.b16 %v656, %v652
        %v737 = vpack.c.b16 %v657, %v653
        %v738 = vpack.c.b16 %v658, %v654
        %v739 = vpack.c.b16 %v659, %v655
        %v740 = vpack.c.b16 %v664, %v660
        %v741 = vpack.c.b16 %v665, %v661
        %v742 = vpack.c.b16 %v666, %v662
        %v743 = vpack.c.b16 %v667, %v663
        %v744 = vpack.c.b16 %v672, %v668
        %v745 = vpack.c.b16 %v673, %v669
        %v746 = vpack.c.b16 %v674, %v670
        %v747 = vpack.c.b16 %v675, %v671
        %v748 = vpack.c.b16 %v680, %v676
        %v749 = vpack.c.b16 %v681, %v677
        %v750 = vpack.c.b16 %v682, %v678
        %v751 = vpack.c.b16 %v683, %v679
        %v752 = vpack.c.b16 %v688, %v684
        %v753 = vpack.c.b16 %v689, %v685
        %v754 = vpack.c.b16 %v690, %v686
        %v755 = vpack.c.b16 %v691, %v687
        %820 = vmatprep.subr.bf16.mxu0 %v721
        %821 = vmatpush1.bf16.msra.mxu0 %v720
        %822 = vmatprep.subr.bf16.mxu0 %v717
        %823 = vmatpush1.bf16.msra.mxu0 %v716
        %824 = vmatprep.subr.bf16.mxu0 %v713
        %825 = vmatpush1.bf16.msra.mxu0 %v712
        %826 = vmatprep.subr.bf16.mxu0 %v709
        %827 = vmatpush1.bf16.msra.mxu0 %v708
        %828 = vmatprep.subr.bf16.mxu0 %v705
        %829 = vmatpush1.bf16.msra.mxu0 %v704
        %830 = vmatprep.subr.bf16.mxu0 %v701
        %831 = vmatpush1.bf16.msra.mxu0 %v700
        %832 = vmatprep.subr.bf16.mxu0 %v697
        %833 = vmatpush1.bf16.msra.mxu0 %v696
        %834 = vmatprep.subr.bf16.mxu0 %v693
        %835 = vmatpush1.bf16.msra.mxu0 %v692
        %836 = vmatprep.subr.bf16.mxu0 %v753
        %837 = vmatpush2.bf16.msra.mxu0 %v752
        %838 = vmatprep.subr.bf16.mxu0 %v749
        %839 = vmatpush2.bf16.msra.mxu0 %v748
        %840 = vmatprep.subr.bf16.mxu0 %v745
        %841 = vmatpush2.bf16.msra.mxu0 %v744
        %842 = vmatprep.subr.bf16.mxu0 %v741
        %843 = vmatpush2.bf16.msra.mxu0 %v740
        %844 = vmatprep.subr.bf16.mxu0 %v737
        %845 = vmatpush2.bf16.msra.mxu0 %v736
        %846 = vmatprep.subr.bf16.mxu0 %v733
        %847 = vmatpush2.bf16.msra.mxu0 %v732
        %848 = vmatprep.subr.bf16.mxu0 %v729
        %849 = vmatpush2.bf16.msra.mxu0 %v728
        %850 = vmatprep.subr.bf16.mxu0 %v725
        %851 = vmatpush2.bf16.msra.mxu0 %v724
        %852 = vmatprep.mubr.bf16.mxu0 %v391
        %853 = vmatmul.mubr.bf16.gmra.mxu0 %v390
        %v854 = vpop.f32.mrf.mxu0
        %v855 = vadd.f32 %v483, %v854
        %v856 = vpop.f32.mrf.mxu0
        %v857 = vadd.f32 %v487, %v856
        %v858 = vpop.f32.mrf.mxu0
        %v859 = vadd.f32 %v483, %v858
        %v860 = vpop.f32.mrf.mxu0
        %v861 = vadd.f32 %v487, %v860
        %862 = vmatprep.mubr.bf16.mxu0 %v393
        %863 = vmatmul.mubr.bf16.gmra.mxu0 %v392
        %v864 = vpop.f32.mrf.mxu0
        %v865 = vadd.f32 %v483, %v864
        %v866 = vpop.f32.mrf.mxu0
        %v867 = vadd.f32 %v487, %v866
        %v868 = vpop.f32.mrf.mxu0
        %v869 = vadd.f32 %v483, %v868
        %v870 = vpop.f32.mrf.mxu0
        %v871 = vadd.f32 %v487, %v870
        %872 = vmatprep.mubr.bf16.mxu0 %v395
        %873 = vmatmul.mubr.bf16.gmra.mxu0 %v394
        %v874 = vpop.f32.mrf.mxu0
        %v875 = vadd.f32 %v483, %v874
        %v876 = vpop.f32.mrf.mxu0
        %v877 = vadd.f32 %v487, %v876
        %v878 = vpop.f32.mrf.mxu0
        %v879 = vadd.f32 %v483, %v878
        %v880 = vpop.f32.mrf.mxu0
        %v881 = vadd.f32 %v487, %v880
        %882 = vmatprep.mubr.bf16.mxu0 %v397
        %883 = vmatmul.mubr.bf16.gmra.mxu0 %v396
        %v884 = vpop.f32.mrf.mxu0
        %v885 = vadd.f32 %v483, %v884
        %v886 = vpop.f32.mrf.mxu0
        %v887 = vadd.f32 %v487, %v886
        %v888 = vpop.f32.mrf.mxu0
        %v889 = vadd.f32 %v483, %v888
        %v890 = vpop.f32.mrf.mxu0
        %v891 = vadd.f32 %v487, %v890
        %892 = vmatprep.mubr.bf16.mxu0 %v399
        %893 = vmatmul.mubr.bf16.gmra.mxu0 %v398
        %v894 = vpop.f32.mrf.mxu0
        %v895 = vadd.f32 %v483, %v894
        %v896 = vpop.f32.mrf.mxu0
        %v897 = vadd.f32 %v487, %v896
        %v898 = vpop.f32.mrf.mxu0
        %v899 = vadd.f32 %v483, %v898
        %v900 = vpop.f32.mrf.mxu0
        %v901 = vadd.f32 %v487, %v900
        %902 = vmatprep.mubr.bf16.mxu0 %v401
        %903 = vmatmul.mubr.bf16.gmra.mxu0 %v400
        %v904 = vpop.f32.mrf.mxu0
        %v905 = vadd.f32 %v483, %v904
        %v906 = vpop.f32.mrf.mxu0
        %v907 = vadd.f32 %v487, %v906
        %v908 = vpop.f32.mrf.mxu0
        %v909 = vadd.f32 %v483, %v908
        %v910 = vpop.f32.mrf.mxu0
        %v911 = vadd.f32 %v487, %v910
        %912 = vmatprep.mubr.bf16.mxu0 %v403
        %913 = vmatmul.mubr.bf16.gmra.mxu0 %v402
        %v914 = vpop.f32.mrf.mxu0
        %v915 = vadd.f32 %v483, %v914
        %v916 = vpop.f32.mrf.mxu0
        %v917 = vadd.f32 %v487, %v916
        %v918 = vpop.f32.mrf.mxu0
        %v919 = vadd.f32 %v483, %v918
        %v920 = vpop.f32.mrf.mxu0
        %v921 = vadd.f32 %v487, %v920
        %922 = vmatprep.mubr.bf16.mxu0 %v405
        %923 = vmatmul.mubr.bf16.gmra.mxu0 %v404
        %v924 = vpop.f32.mrf.mxu0
        %v925 = vadd.f32 %v483, %v924
        %v926 = vpop.f32.mrf.mxu0
        %v927 = vadd.f32 %v487, %v926
        %v928 = vpop.f32.mrf.mxu0
        %v929 = vadd.f32 %v483, %v928
        %v930 = vpop.f32.mrf.mxu0
        %v931 = vadd.f32 %v487, %v930
        %932 = vmatprep.mubr.bf16.mxu0 %v407
        %933 = vmatmul.mubr.bf16.gmra.mxu0 %v406
        %v934 = vpop.f32.mrf.mxu0
        %v935 = vadd.f32 %v483, %v934
        %v936 = vpop.f32.mrf.mxu0
        %v937 = vadd.f32 %v487, %v936
        %v938 = vpop.f32.mrf.mxu0
        %v939 = vadd.f32 %v483, %v938
        %v940 = vpop.f32.mrf.mxu0
        %v941 = vadd.f32 %v487, %v940
        %942 = vmatprep.mubr.bf16.mxu0 %v409
        %943 = vmatmul.mubr.bf16.gmra.mxu0 %v408
        %v944 = vpop.f32.mrf.mxu0
        %v945 = vadd.f32 %v483, %v944
        %v946 = vpop.f32.mrf.mxu0
        %v947 = vadd.f32 %v487, %v946
        %v948 = vpop.f32.mrf.mxu0
        %v949 = vadd.f32 %v483, %v948
        %v950 = vpop.f32.mrf.mxu0
        %v951 = vadd.f32 %v487, %v950
        %952 = vmatprep.mubr.bf16.mxu0 %v411
        %953 = vmatmul.mubr.bf16.gmra.mxu0 %v410
        %v954 = vpop.f32.mrf.mxu0
        %v955 = vadd.f32 %v483, %v954
        %v956 = vpop.f32.mrf.mxu0
        %v957 = vadd.f32 %v487, %v956
        %v958 = vpop.f32.mrf.mxu0
        %v959 = vadd.f32 %v483, %v958
        %v960 = vpop.f32.mrf.mxu0
        %v961 = vadd.f32 %v487, %v960
        %962 = vmatprep.mubr.bf16.mxu0 %v413
        %963 = vmatmul.mubr.bf16.gmra.mxu0 %v412
        %v964 = vpop.f32.mrf.mxu0
        %v965 = vadd.f32 %v483, %v964
        %v966 = vpop.f32.mrf.mxu0
        %v967 = vadd.f32 %v487, %v966
        %v968 = vpop.f32.mrf.mxu0
        %v969 = vadd.f32 %v483, %v968
        %v970 = vpop.f32.mrf.mxu0
        %v971 = vadd.f32 %v487, %v970
        %972 = vdwg.mxu0
        %973 = vmatprep.subr.bf16.mxu0 %v723
        %974 = vmatpush1.bf16.msra.mxu0 %v722
        %975 = vmatprep.subr.bf16.mxu0 %v719
        %976 = vmatpush1.bf16.msra.mxu0 %v718
        %977 = vmatprep.subr.bf16.mxu0 %v715
        %978 = vmatpush1.bf16.msra.mxu0 %v714
        %979 = vmatprep.subr.bf16.mxu0 %v711
        %980 = vmatpush1.bf16.msra.mxu0 %v710
        %981 = vmatprep.subr.bf16.mxu0 %v707
        %982 = vmatpush1.bf16.msra.mxu0 %v706
        %983 = vmatprep.subr.bf16.mxu0 %v703
        %984 = vmatpush1.bf16.msra.mxu0 %v702
        %985 = vmatprep.subr.bf16.mxu0 %v699
        %986 = vmatpush1.bf16.msra.mxu0 %v698
        %987 = vmatprep.subr.bf16.mxu0 %v695
        %988 = vmatpush1.bf16.msra.mxu0 %v694
        %989 = vmatprep.subr.bf16.mxu0 %v755
        %990 = vmatpush2.bf16.msra.mxu0 %v754
        %991 = vmatprep.subr.bf16.mxu0 %v751
        %992 = vmatpush2.bf16.msra.mxu0 %v750
        %993 = vmatprep.subr.bf16.mxu0 %v747
        %994 = vmatpush2.bf16.msra.mxu0 %v746
        %995 = vmatprep.subr.bf16.mxu0 %v743
        %996 = vmatpush2.bf16.msra.mxu0 %v742
        %997 = vmatprep.subr.bf16.mxu0 %v739
        %998 = vmatpush2.bf16.msra.mxu0 %v738
        %999 = vmatprep.subr.bf16.mxu0 %v735
        %1000 = vmatpush2.bf16.msra.mxu0 %v734
        %1001 = vmatprep.subr.bf16.mxu0 %v731
        %1002 = vmatpush2.bf16.msra.mxu0 %v730
        %1003 = vmatprep.subr.bf16.mxu0 %v727
        %1004 = vmatpush2.bf16.msra.mxu0 %v726
        %1005 = vmatprep.mubr.bf16.mxu0 %v391
        %1006 = vmatmul.mubr.bf16.gmra.mxu0 %v390
        %v1007 = vpop.f32.mrf.mxu0
        %v1008 = vadd.f32 %v491, %v1007
        %v1009 = vpop.f32.mrf.mxu0
        %v1010 = vadd.f32 %v495, %v1009
        %v1011 = vpop.f32.mrf.mxu0
        %v1012 = vadd.f32 %v491, %v1011
        %v1013 = vpop.f32.mrf.mxu0
        %v1014 = vadd.f32 %v495, %v1013
        %1015 = vmatprep.mubr.bf16.mxu0 %v393
        %1016 = vmatmul.mubr.bf16.gmra.mxu0 %v392
        %v1017 = vpop.f32.mrf.mxu0
        %v1018 = vadd.f32 %v491, %v1017
        %v1019 = vpop.f32.mrf.mxu0
        %v1020 = vadd.f32 %v495, %v1019
        %v1021 = vpop.f32.mrf.mxu0
        %v1022 = vadd.f32 %v491, %v1021
        %v1023 = vpop.f32.mrf.mxu0
        %v1024 = vadd.f32 %v495, %v1023
        %1025 = vmatprep.mubr.bf16.mxu0 %v395
        %1026 = vmatmul.mubr.bf16.gmra.mxu0 %v394
        %v1027 = vpop.f32.mrf.mxu0
        %v1028 = vadd.f32 %v491, %v1027
        %v1029 = vpop.f32.mrf.mxu0
        %v1030 = vadd.f32 %v495, %v1029
        %v1031 = vpop.f32.mrf.mxu0
        %v1032 = vadd.f32 %v491, %v1031
        %v1033 = vpop.f32.mrf.mxu0
        %v1034 = vadd.f32 %v495, %v1033
        %1035 = vmatprep.mubr.bf16.mxu0 %v397
        %1036 = vmatmul.mubr.bf16.gmra.mxu0 %v396
        %v1037 = vpop.f32.mrf.mxu0
        %v1038 = vadd.f32 %v491, %v1037
        %v1039 = vpop.f32.mrf.mxu0
        %v1040 = vadd.f32 %v495, %v1039
        %v1041 = vpop.f32.mrf.mxu0
        %v1042 = vadd.f32 %v491, %v1041
        %v1043 = vpop.f32.mrf.mxu0
        %v1044 = vadd.f32 %v495, %v1043
        %1045 = vmatprep.mubr.bf16.mxu0 %v399
        %1046 = vmatmul.mubr.bf16.gmra.mxu0 %v398
        %v1047 = vpop.f32.mrf.mxu0
        %v1048 = vadd.f32 %v491, %v1047
        %v1049 = vpop.f32.mrf.mxu0
        %v1050 = vadd.f32 %v495, %v1049
        %v1051 = vpop.f32.mrf.mxu0
        %v1052 = vadd.f32 %v491, %v1051
        %v1053 = vpop.f32.mrf.mxu0
        %v1054 = vadd.f32 %v495, %v1053
        %1055 = vmatprep.mubr.bf16.mxu0 %v401
        %1056 = vmatmul.mubr.bf16.gmra.mxu0 %v400
        %v1057 = vpop.f32.mrf.mxu0
        %v1058 = vadd.f32 %v491, %v1057
        %v1059 = vpop.f32.mrf.mxu0
        %v1060 = vadd.f32 %v495, %v1059
        %v1061 = vpop.f32.mrf.mxu0
        %v1062 = vadd.f32 %v491, %v1061
        %v1063 = vpop.f32.mrf.mxu0
        %v1064 = vadd.f32 %v495, %v1063
        %1065 = vmatprep.mubr.bf16.mxu0 %v403
        %1066 = vmatmul.mubr.bf16.gmra.mxu0 %v402
        %v1067 = vpop.f32.mrf.mxu0
        %v1068 = vadd.f32 %v491, %v1067
        %v1069 = vpop.f32.mrf.mxu0
        %v1070 = vadd.f32 %v495, %v1069
        %v1071 = vpop.f32.mrf.mxu0
        %v1072 = vadd.f32 %v491, %v1071
        %v1073 = vpop.f32.mrf.mxu0
        %v1074 = vadd.f32 %v495, %v1073
        %1075 = vmatprep.mubr.bf16.mxu0 %v405
        %1076 = vmatmul.mubr.bf16.gmra.mxu0 %v404
        %v1077 = vpop.f32.mrf.mxu0
        %v1078 = vadd.f32 %v491, %v1077
        %v1079 = vpop.f32.mrf.mxu0
        %v1080 = vadd.f32 %v495, %v1079
        %v1081 = vpop.f32.mrf.mxu0
        %v1082 = vadd.f32 %v491, %v1081
        %v1083 = vpop.f32.mrf.mxu0
        %v1084 = vadd.f32 %v495, %v1083
        %1085 = vmatprep.mubr.bf16.mxu0 %v407
        %1086 = vmatmul.mubr.bf16.gmra.mxu0 %v406
        %v1087 = vpop.f32.mrf.mxu0
        %v1088 = vadd.f32 %v491, %v1087
        %v1089 = vpop.f32.mrf.mxu0
        %v1090 = vadd.f32 %v495, %v1089
        %v1091 = vpop.f32.mrf.mxu0
        %v1092 = vadd.f32 %v491, %v1091
        %v1093 = vpop.f32.mrf.mxu0
        %v1094 = vadd.f32 %v495, %v1093
        %1095 = vmatprep.mubr.bf16.mxu0 %v409
        %1096 = vmatmul.mubr.bf16.gmra.mxu0 %v408
        %v1097 = vpop.f32.mrf.mxu0
        %v1098 = vadd.f32 %v491, %v1097
        %v1099 = vpop.f32.mrf.mxu0
        %v1100 = vadd.f32 %v495, %v1099
        %v1101 = vpop.f32.mrf.mxu0
        %v1102 = vadd.f32 %v491, %v1101
        %v1103 = vpop.f32.mrf.mxu0
        %v1104 = vadd.f32 %v495, %v1103
        %1105 = vmatprep.mubr.bf16.mxu0 %v411
        %1106 = vmatmul.mubr.bf16.gmra.mxu0 %v410
        %v1107 = vpop.f32.mrf.mxu0
        %v1108 = vadd.f32 %v491, %v1107
        %v1109 = vpop.f32.mrf.mxu0
        %v1110 = vadd.f32 %v495, %v1109
        %v1111 = vpop.f32.mrf.mxu0
        %v1112 = vadd.f32 %v491, %v1111
        %v1113 = vpop.f32.mrf.mxu0
        %v1114 = vadd.f32 %v495, %v1113
        %1115 = vmatprep.mubr.bf16.mxu0 %v413
        %1116 = vmatmul.mubr.bf16.gmra.mxu0 %v412
        %v1117 = vpop.f32.mrf.mxu0
        %v1118 = vadd.f32 %v491, %v1117
        %v1119 = vpop.f32.mrf.mxu0
        %v1120 = vadd.f32 %v495, %v1119
        %v1121 = vpop.f32.mrf.mxu0
        %v1122 = vadd.f32 %v491, %v1121
        %v1123 = vpop.f32.mrf.mxu0
        %v1124 = vadd.f32 %v495, %v1123
        %1125 = vdwg.mxu0
        %v1126 = vmax.f32 %v855, 0.0
        %v1127 = vmax.f32 %v857, 0.0
        %v1128 = vmax.f32 %v1008, 0.0
        %v1129 = vmax.f32 %v1010, 0.0
        %v1130 = vmax.f32 %v859, 0.0
        %v1131 = vmax.f32 %v861, 0.0
        %v1132 = vmax.f32 %v1012, 0.0
        %v1133 = vmax.f32 %v1014, 0.0
        %v1134 = vmax.f32 %v865, 0.0
        %v1135 = vmax.f32 %v867, 0.0
        %v1136 = vmax.f32 %v1018, 0.0
        %v1137 = vmax.f32 %v1020, 0.0
        %v1138 = vmax.f32 %v869, 0.0
        %v1139 = vmax.f32 %v871, 0.0
        %v1140 = vmax.f32 %v1022, 0.0
        %v1141 = vmax.f32 %v1024, 0.0
        %v1142 = vmax.f32 %v875, 0.0
        %v1143 = vmax.f32 %v877, 0.0
        %v1144 = vmax.f32 %v1028, 0.0
        %v1145 = vmax.f32 %v1030, 0.0
        %v1146 = vmax.f32 %v879, 0.0
        %v1147 = vmax.f32 %v881, 0.0
        %v1148 = vmax.f32 %v1032, 0.0
        %v1149 = vmax.f32 %v1034, 0.0
        %v1150 = vmax.f32 %v885, 0.0
        %v1151 = vmax.f32 %v887, 0.0
        %v1152 = vmax.f32 %v1038, 0.0
        %v1153 = vmax.f32 %v1040, 0.0
        %v1154 = vmax.f32 %v889, 0.0
        %v1155 = vmax.f32 %v891, 0.0
        %v1156 = vmax.f32 %v1042, 0.0
        %v1157 = vmax.f32 %v1044, 0.0
        %v1158 = vmax.f32 %v895, 0.0
        %v1159 = vmax.f32 %v897, 0.0
        %v1160 = vmax.f32 %v1048, 0.0
        %v1161 = vmax.f32 %v1050, 0.0
        %v1162 = vmax.f32 %v899, 0.0
        %v1163 = vmax.f32 %v901, 0.0
        %v1164 = vmax.f32 %v1052, 0.0
        %v1165 = vmax.f32 %v1054, 0.0
        %v1166 = vmax.f32 %v905, 0.0
        %v1167 = vmax.f32 %v907, 0.0
        %v1168 = vmax.f32 %v1058, 0.0
        %v1169 = vmax.f32 %v1060, 0.0
        %v1170 = vmax.f32 %v909, 0.0
        %v1171 = vmax.f32 %v911, 0.0
        %v1172 = vmax.f32 %v1062, 0.0
        %v1173 = vmax.f32 %v1064, 0.0
        %v1174 = vmax.f32 %v915, 0.0
        %v1175 = vmax.f32 %v917, 0.0
        %v1176 = vmax.f32 %v1068, 0.0
        %v1177 = vmax.f32 %v1070, 0.0
        %v1178 = vmax.f32 %v919, 0.0
        %v1179 = vmax.f32 %v921, 0.0
        %v1180 = vmax.f32 %v1072, 0.0
        %v1181 = vmax.f32 %v1074, 0.0
        %v1182 = vmax.f32 %v925, 0.0
        %v1183 = vmax.f32 %v927, 0.0
        %v1184 = vmax.f32 %v1078, 0.0
        %v1185 = vmax.f32 %v1080, 0.0
        %v1186 = vmax.f32 %v929, 0.0
        %v1187 = vmax.f32 %v931, 0.0
        %v1188 = vmax.f32 %v1082, 0.0
        %v1189 = vmax.f32 %v1084, 0.0
        %v1190 = vmax.f32 %v935, 0.0
        %v1191 = vmax.f32 %v937, 0.0
        %v1192 = vmax.f32 %v1088, 0.0
        %v1193 = vmax.f32 %v1090, 0.0
        %v1194 = vmax.f32 %v939, 0.0
        %v1195 = vmax.f32 %v941, 0.0
        %v1196 = vmax.f32 %v1092, 0.0
        %v1197 = vmax.f32 %v1094, 0.0
        %v1198 = vmax.f32 %v945, 0.0
        %v1199 = vmax.f32 %v947, 0.0
        %v1200 = vmax.f32 %v1098, 0.0
        %v1201 = vmax.f32 %v1100, 0.0
        %v1202 = vmax.f32 %v949, 0.0
        %v1203 = vmax.f32 %v951, 0.0
        %v1204 = vmax.f32 %v1102, 0.0
        %v1205 = vmax.f32 %v1104, 0.0
        %v1206 = vmax.f32 %v955, 0.0
        %v1207 = vmax.f32 %v957, 0.0
        %v1208 = vmax.f32 %v1108, 0.0
        %v1209 = vmax.f32 %v1110, 0.0
        %v1210 = vmax.f32 %v959, 0.0
        %v1211 = vmax.f32 %v961, 0.0
        %v1212 = vmax.f32 %v1112, 0.0
        %v1213 = vmax.f32 %v1114, 0.0
        %v1214 = vmax.f32 %v965, 0.0
        %v1215 = vmax.f32 %v967, 0.0
        %v1216 = vmax.f32 %v1118, 0.0
        %v1217 = vmax.f32 %v1120, 0.0
        %v1218 = vmax.f32 %v969, 0.0
        %v1219 = vmax.f32 %v971, 0.0
        %v1220 = vmax.f32 %v1122, 0.0
        %v1221 = vmax.f32 %v1124, 0.0
        %v1222 = vpack.c.bf16 %v1130, %v1126
        %v1223 = vpack.c.bf16 %v1131, %v1127
        %v1224 = vpack.c.bf16 %v1132, %v1128
        %v1225 = vpack.c.bf16 %v1133, %v1129
        %v1226 = vpack.c.bf16 %v1138, %v1134
        %v1227 = vpack.c.bf16 %v1139, %v1135
        %v1228 = vpack.c.bf16 %v1140, %v1136
        %v1229 = vpack.c.bf16 %v1141, %v1137
        %v1230 = vpack.c.bf16 %v1146, %v1142
        %v1231 = vpack.c.bf16 %v1147, %v1143
        %v1232 = vpack.c.bf16 %v1148, %v1144
        %v1233 = vpack.c.bf16 %v1149, %v1145
        %v1234 = vpack.c.bf16 %v1154, %v1150
        %v1235 = vpack.c.bf16 %v1155, %v1151
        %v1236 = vpack.c.bf16 %v1156, %v1152
        %v1237 = vpack.c.bf16 %v1157, %v1153
        %v1238 = vpack.c.bf16 %v1162, %v1158
        %v1239 = vpack.c.bf16 %v1163, %v1159
        %v1240 = vpack.c.bf16 %v1164, %v1160
        %v1241 = vpack.c.bf16 %v1165, %v1161
        %v1242 = vpack.c.bf16 %v1170, %v1166
        %v1243 = vpack.c.bf16 %v1171, %v1167
        %v1244 = vpack.c.bf16 %v1172, %v1168
        %v1245 = vpack.c.bf16 %v1173, %v1169
        %v1246 = vpack.c.bf16 %v1178, %v1174
        %v1247 = vpack.c.bf16 %v1179, %v1175
        %v1248 = vpack.c.bf16 %v1180, %v1176
        %v1249 = vpack.c.bf16 %v1181, %v1177
        %v1250 = vpack.c.bf16 %v1186, %v1182
        %v1251 = vpack.c.bf16 %v1187, %v1183
        %v1252 = vpack.c.bf16 %v1188, %v1184
        %v1253 = vpack.c.bf16 %v1189, %v1185
        %v1254 = vpack.c.bf16 %v1194, %v1190
        %v1255 = vpack.c.bf16 %v1195, %v1191
        %v1256 = vpack.c.bf16 %v1196, %v1192
        %v1257 = vpack.c.bf16 %v1197, %v1193
        %v1258 = vpack.c.bf16 %v1202, %v1198
        %v1259 = vpack.c.bf16 %v1203, %v1199
        %v1260 = vpack.c.bf16 %v1204, %v1200
        %v1261 = vpack.c.bf16 %v1205, %v1201
        %v1262 = vpack.c.bf16 %v1210, %v1206
        %v1263 = vpack.c.bf16 %v1211, %v1207
        %v1264 = vpack.c.bf16 %v1212, %v1208
        %v1265 = vpack.c.bf16 %v1213, %v1209
        %v1266 = vpack.c.bf16 %v1218, %v1214
        %v1267 = vpack.c.bf16 %v1219, %v1215
        %v1268 = vpack.c.bf16 %v1220, %v1216
        %v1269 = vpack.c.bf16 %v1221, %v1217
        %v1270 = vld [vmem:[#allocation8] sm:$0xff]
        %v1271 = vld [vmem:[#allocation8 + $0x8] sm:$0xff]
        %v1272 = vld [vmem:[#allocation8 + $0x10] sm:$0xff]
        %v1273 = vld [vmem:[#allocation8 + $0x18] sm:$0xff]
        %v1274 = vld [vmem:[#allocation8 + $0x20] sm:$0xff]
        %v1275 = vld [vmem:[#allocation8 + $0x28] sm:$0xff]
        %v1276 = vld [vmem:[#allocation8 + $0x30] sm:$0xff]
        %v1277 = vld [vmem:[#allocation8 + $0x38] sm:$0xff]
        %v1278 = vld [vmem:[#allocation8 + $0x40] sm:$0xff]
        %v1279 = vld [vmem:[#allocation8 + $0x48] sm:$0xff]
        %v1280 = vld [vmem:[#allocation8 + $0x50] sm:$0xff]
        %v1281 = vld [vmem:[#allocation8 + $0x58] sm:$0xff]
        %v1282 = vld [vmem:[#allocation8 + $0x60] sm:$0xff]
        %v1283 = vld [vmem:[#allocation8 + $0x68] sm:$0xff]
        %v1284 = vld [vmem:[#allocation8 + $0x70] sm:$0xff]
        %v1285 = vld [vmem:[#allocation8 + $0x78] sm:$0xff]
        %v1286 = vld [vmem:[#allocation8 + $0x80] sm:$0xff]
        %v1287 = vld [vmem:[#allocation8 + $0x88] sm:$0xff]
        %v1288 = vld [vmem:[#allocation8 + $0x90] sm:$0xff]
        %v1289 = vld [vmem:[#allocation8 + $0x98] sm:$0xff]
        %v1290 = vld [vmem:[#allocation8 + $0xa0] sm:$0xff]
        %v1291 = vld [vmem:[#allocation8 + $0xa8] sm:$0xff]
        %v1292 = vld [vmem:[#allocation8 + $0xb0] sm:$0xff]
        %v1293 = vld [vmem:[#allocation8 + $0xb8] sm:$0xff]
        %v1294 = vld [vmem:[#allocation8 + $0xc0] sm:$0xff]
        %v1295 = vld [vmem:[#allocation8 + $0xc8] sm:$0xff]
        %v1296 = vld [vmem:[#allocation8 + $0xd0] sm:$0xff]
        %v1297 = vld [vmem:[#allocation8 + $0xd8] sm:$0xff]
        %v1298 = vld [vmem:[#allocation8 + $0xe0] sm:$0xff]
        %v1299 = vld [vmem:[#allocation8 + $0xe8] sm:$0xff]
        %v1300 = vld [vmem:[#allocation8 + $0xf0] sm:$0xff]
        %v1301 = vld [vmem:[#allocation8 + $0xf8] sm:$0xff]
        %v1302 = vld [vmem:[#allocation8 + $0x100] sm:$0xff]
        %v1303 = vld [vmem:[#allocation8 + $0x108] sm:$0xff]
        %v1304 = vld [vmem:[#allocation8 + $0x110] sm:$0xff]
        %v1305 = vld [vmem:[#allocation8 + $0x118] sm:$0xff]
        %v1306 = vld [vmem:[#allocation8 + $0x120] sm:$0xff]
        %v1307 = vld [vmem:[#allocation8 + $0x128] sm:$0xff]
        %v1308 = vld [vmem:[#allocation8 + $0x130] sm:$0xff]
        %v1309 = vld [vmem:[#allocation8 + $0x138] sm:$0xff]
        %v1310 = vld [vmem:[#allocation8 + $0x140] sm:$0xff]
        %v1311 = vld [vmem:[#allocation8 + $0x148] sm:$0xff]
        %v1312 = vld [vmem:[#allocation8 + $0x150] sm:$0xff]
        %v1313 = vld [vmem:[#allocation8 + $0x158] sm:$0xff]
        %v1314 = vld [vmem:[#allocation8 + $0x160] sm:$0xff]
        %v1315 = vld [vmem:[#allocation8 + $0x168] sm:$0xff]
        %v1316 = vld [vmem:[#allocation8 + $0x170] sm:$0xff]
        %v1317 = vld [vmem:[#allocation8 + $0x178] sm:$0xff]
        %v1318 = vld [vmem:[#allocation8 + $0x180] sm:$0xff]
        %v1319 = vld [vmem:[#allocation8 + $0x188] sm:$0xff]
        %v1320 = vld [vmem:[#allocation8 + $0x190] sm:$0xff]
        %v1321 = vld [vmem:[#allocation8 + $0x198] sm:$0xff]
        %v1322 = vld [vmem:[#allocation8 + $0x1a0] sm:$0xff]
        %v1323 = vld [vmem:[#allocation8 + $0x1a8] sm:$0xff]
        %v1324 = vld [vmem:[#allocation8 + $0x1b0] sm:$0xff]
        %v1325 = vld [vmem:[#allocation8 + $0x1b8] sm:$0xff]
        %v1326 = vld [vmem:[#allocation8 + $0x1c0] sm:$0xff]
        %v1327 = vld [vmem:[#allocation8 + $0x1c8] sm:$0xff]
        %v1328 = vld [vmem:[#allocation8 + $0x1d0] sm:$0xff]
        %v1329 = vld [vmem:[#allocation8 + $0x1d8] sm:$0xff]
        %v1330 = vld [vmem:[#allocation8 + $0x1e0] sm:$0xff]
        %v1331 = vld [vmem:[#allocation8 + $0x1e8] sm:$0xff]
        %v1332 = vld [vmem:[#allocation8 + $0x1f0] sm:$0xff]
        %v1333 = vld [vmem:[#allocation8 + $0x1f8] sm:$0xff]
        %v1334 = vld [vmem:[%s4] sm:$0x3]
        %v1336 = vlaneseq
        %v1337 = vshrl.u32 %v1336, 7
        %v1338 = vsub.s32 0, %v1337
        %v1339 = vrot.slane %v1334, %v1338
        %v1340 = vlaneseq
        %v1341 = vshrl.u32 %v1340, 7
        %v1342 = vsub.s32 1, %v1341
        %v1343 = vrot.slane %v1334, %v1342
        %v1410 = vunpack.c.l.b16 %v1270
        %v1411 = vunpack.c.h.b16 %v1270
        %v1412 = vunpack.c.l.b16 %v1271
        %v1413 = vunpack.c.h.b16 %v1271
        %v1414 = vunpack.c.l.b16 %v1272
        %v1415 = vunpack.c.h.b16 %v1272
        %v1416 = vunpack.c.l.b16 %v1273
        %v1417 = vunpack.c.h.b16 %v1273
        %v1418 = vunpack.c.l.b16 %v1274
        %v1419 = vunpack.c.h.b16 %v1274
        %v1420 = vunpack.c.l.b16 %v1275
        %v1421 = vunpack.c.h.b16 %v1275
        %v1422 = vunpack.c.l.b16 %v1276
        %v1423 = vunpack.c.h.b16 %v1276
        %v1424 = vunpack.c.l.b16 %v1277
        %v1425 = vunpack.c.h.b16 %v1277
        %v1426 = vunpack.c.l.b16 %v1278
        %v1427 = vunpack.c.h.b16 %v1278
        %v1428 = vunpack.c.l.b16 %v1279
        %v1429 = vunpack.c.h.b16 %v1279
        %v1430 = vunpack.c.l.b16 %v1280
        %v1431 = vunpack.c.h.b16 %v1280
        %v1432 = vunpack.c.l.b16 %v1281
        %v1433 = vunpack.c.h.b16 %v1281
        %v1434 = vunpack.c.l.b16 %v1282
        %v1435 = vunpack.c.h.b16 %v1282
        %v1436 = vunpack.c.l.b16 %v1283
        %v1437 = vunpack.c.h.b16 %v1283
        %v1438 = vunpack.c.l.b16 %v1284
        %v1439 = vunpack.c.h.b16 %v1284
        %v1440 = vunpack.c.l.b16 %v1285
        %v1441 = vunpack.c.h.b16 %v1285
        %v1442 = vunpack.c.l.b16 %v1286
        %v1443 = vunpack.c.h.b16 %v1286
        %v1444 = vunpack.c.l.b16 %v1287
        %v1445 = vunpack.c.h.b16 %v1287
        %v1446 = vunpack.c.l.b16 %v1288
        %v1447 = vunpack.c.h.b16 %v1288
        %v1448 = vunpack.c.l.b16 %v1289
        %v1449 = vunpack.c.h.b16 %v1289
        %v1450 = vunpack.c.l.b16 %v1290
        %v1451 = vunpack.c.h.b16 %v1290
        %v1452 = vunpack.c.l.b16 %v1291
        %v1453 = vunpack.c.h.b16 %v1291
        %v1454 = vunpack.c.l.b16 %v1292
        %v1455 = vunpack.c.h.b16 %v1292
        %v1456 = vunpack.c.l.b16 %v1293
        %v1457 = vunpack.c.h.b16 %v1293
        %v1458 = vunpack.c.l.b16 %v1294
        %v1459 = vunpack.c.h.b16 %v1294
        %v1460 = vunpack.c.l.b16 %v1295
        %v1461 = vunpack.c.h.b16 %v1295
        %v1462 = vunpack.c.l.b16 %v1296
        %v1463 = vunpack.c.h.b16 %v1296
        %v1464 = vunpack.c.l.b16 %v1297
        %v1465 = vunpack.c.h.b16 %v1297
        %v1466 = vunpack.c.l.b16 %v1298
        %v1467 = vunpack.c.h.b16 %v1298
        %v1468 = vunpack.c.l.b16 %v1299
        %v1469 = vunpack.c.h.b16 %v1299
        %v1470 = vunpack.c.l.b16 %v1300
        %v1471 = vunpack.c.h.b16 %v1300
        %v1472 = vunpack.c.l.b16 %v1301
        %v1473 = vunpack.c.h.b16 %v1301
        %v1474 = vunpack.c.l.b16 %v1302
        %v1475 = vunpack.c.h.b16 %v1302
        %v1476 = vunpack.c.l.b16 %v1303
        %v1477 = vunpack.c.h.b16 %v1303
        %v1478 = vunpack.c.l.b16 %v1304
        %v1479 = vunpack.c.h.b16 %v1304
        %v1480 = vunpack.c.l.b16 %v1305
        %v1481 = vunpack.c.h.b16 %v1305
        %v1482 = vunpack.c.l.b16 %v1306
        %v1483 = vunpack.c.h.b16 %v1306
        %v1484 = vunpack.c.l.b16 %v1307
        %v1485 = vunpack.c.h.b16 %v1307
        %v1486 = vunpack.c.l.b16 %v1308
        %v1487 = vunpack.c.h.b16 %v1308
        %v1488 = vunpack.c.l.b16 %v1309
        %v1489 = vunpack.c.h.b16 %v1309
        %v1490 = vunpack.c.l.b16 %v1310
        %v1491 = vunpack.c.h.b16 %v1310
        %v1492 = vunpack.c.l.b16 %v1311
        %v1493 = vunpack.c.h.b16 %v1311
        %v1494 = vunpack.c.l.b16 %v1312
        %v1495 = vunpack.c.h.b16 %v1312
        %v1496 = vunpack.c.l.b16 %v1313
        %v1497 = vunpack.c.h.b16 %v1313
        %v1498 = vunpack.c.l.b16 %v1314
        %v1499 = vunpack.c.h.b16 %v1314
        %v1500 = vunpack.c.l.b16 %v1315
        %v1501 = vunpack.c.h.b16 %v1315
        %v1502 = vunpack.c.l.b16 %v1316
        %v1503 = vunpack.c.h.b16 %v1316
        %v1504 = vunpack.c.l.b16 %v1317
        %v1505 = vunpack.c.h.b16 %v1317
        %v1506 = vunpack.c.l.b16 %v1318
        %v1507 = vunpack.c.h.b16 %v1318
        %v1508 = vunpack.c.l.b16 %v1319
        %v1509 = vunpack.c.h.b16 %v1319
        %v1510 = vunpack.c.l.b16 %v1320
        %v1511 = vunpack.c.h.b16 %v1320
        %v1512 = vunpack.c.l.b16 %v1321
        %v1513 = vunpack.c.h.b16 %v1321
        %v1514 = vunpack.c.l.b16 %v1322
        %v1515 = vunpack.c.h.b16 %v1322
        %v1516 = vunpack.c.l.b16 %v1323
        %v1517 = vunpack.c.h.b16 %v1323
        %v1518 = vunpack.c.l.b16 %v1324
        %v1519 = vunpack.c.h.b16 %v1324
        %v1520 = vunpack.c.l.b16 %v1325
        %v1521 = vunpack.c.h.b16 %v1325
        %v1522 = vunpack.c.l.b16 %v1326
        %v1523 = vunpack.c.h.b16 %v1326
        %v1524 = vunpack.c.l.b16 %v1327
        %v1525 = vunpack.c.h.b16 %v1327
        %v1526 = vunpack.c.l.b16 %v1328
        %v1527 = vunpack.c.h.b16 %v1328
        %v1528 = vunpack.c.l.b16 %v1329
        %v1529 = vunpack.c.h.b16 %v1329
        %v1530 = vunpack.c.l.b16 %v1330
        %v1531 = vunpack.c.h.b16 %v1330
        %v1532 = vunpack.c.l.b16 %v1331
        %v1533 = vunpack.c.h.b16 %v1331
        %v1534 = vunpack.c.l.b16 %v1332
        %v1535 = vunpack.c.h.b16 %v1332
        %v1536 = vunpack.c.l.b16 %v1333
        %v1537 = vunpack.c.h.b16 %v1333
        %v1538 = vpack.c.b16 %v1412, %v1410
        %v1539 = vpack.c.b16 %v1413, %v1411
        %v1540 = vpack.c.b16 %v1416, %v1414
        %v1541 = vpack.c.b16 %v1417, %v1415
        %v1542 = vpack.c.b16 %v1420, %v1418
        %v1543 = vpack.c.b16 %v1421, %v1419
        %v1544 = vpack.c.b16 %v1424, %v1422
        %v1545 = vpack.c.b16 %v1425, %v1423
        %v1546 = vpack.c.b16 %v1428, %v1426
        %v1547 = vpack.c.b16 %v1429, %v1427
        %v1548 = vpack.c.b16 %v1432, %v1430
        %v1549 = vpack.c.b16 %v1433, %v1431
        %v1550 = vpack.c.b16 %v1436, %v1434
        %v1551 = vpack.c.b16 %v1437, %v1435
        %v1552 = vpack.c.b16 %v1440, %v1438
        %v1553 = vpack.c.b16 %v1441, %v1439
        %v1554 = vpack.c.b16 %v1444, %v1442
        %v1555 = vpack.c.b16 %v1445, %v1443
        %v1556 = vpack.c.b16 %v1448, %v1446
        %v1557 = vpack.c.b16 %v1449, %v1447
        %v1558 = vpack.c.b16 %v1452, %v1450
        %v1559 = vpack.c.b16 %v1453, %v1451
        %v1560 = vpack.c.b16 %v1456, %v1454
        %v1561 = vpack.c.b16 %v1457, %v1455
        %v1562 = vpack.c.b16 %v1460, %v1458
        %v1563 = vpack.c.b16 %v1461, %v1459
        %v1564 = vpack.c.b16 %v1464, %v1462
        %v1565 = vpack.c.b16 %v1465, %v1463
        %v1566 = vpack.c.b16 %v1468, %v1466
        %v1567 = vpack.c.b16 %v1469, %v1467
        %v1568 = vpack.c.b16 %v1472, %v1470
        %v1569 = vpack.c.b16 %v1473, %v1471
        %v1570 = vpack.c.b16 %v1476, %v1474
        %v1571 = vpack.c.b16 %v1477, %v1475
        %v1572 = vpack.c.b16 %v1480, %v1478
        %v1573 = vpack.c.b16 %v1481, %v1479
        %v1574 = vpack.c.b16 %v1484, %v1482
        %v1575 = vpack.c.b16 %v1485, %v1483
        %v1576 = vpack.c.b16 %v1488, %v1486
        %v1577 = vpack.c.b16 %v1489, %v1487
        %v1578 = vpack.c.b16 %v1492, %v1490
        %v1579 = vpack.c.b16 %v1493, %v1491
        %v1580 = vpack.c.b16 %v1496, %v1494
        %v1581 = vpack.c.b16 %v1497, %v1495
        %v1582 = vpack.c.b16 %v1500, %v1498
        %v1583 = vpack.c.b16 %v1501, %v1499
        %v1584 = vpack.c.b16 %v1504, %v1502
        %v1585 = vpack.c.b16 %v1505, %v1503
        %v1586 = vpack.c.b16 %v1508, %v1506
        %v1587 = vpack.c.b16 %v1509, %v1507
        %v1588 = vpack.c.b16 %v1512, %v1510
        %v1589 = vpack.c.b16 %v1513, %v1511
        %v1590 = vpack.c.b16 %v1516, %v1514
        %v1591 = vpack.c.b16 %v1517, %v1515
        %v1592 = vpack.c.b16 %v1520, %v1518
        %v1593 = vpack.c.b16 %v1521, %v1519
        %v1594 = vpack.c.b16 %v1524, %v1522
        %v1595 = vpack.c.b16 %v1525, %v1523
        %v1596 = vpack.c.b16 %v1528, %v1526
        %v1597 = vpack.c.b16 %v1529, %v1527
        %v1598 = vpack.c.b16 %v1532, %v1530
        %v1599 = vpack.c.b16 %v1533, %v1531
        %v1600 = vpack.c.b16 %v1536, %v1534
        %v1601 = vpack.c.b16 %v1537, %v1535
        %1666 = vmatprep.subr.bf16.mxu0 %v1553
        %1667 = vmatpush1.bf16.msra.mxu0 %v1552
        %1668 = vmatprep.subr.bf16.mxu0 %v1551
        %1669 = vmatpush1.bf16.msra.mxu0 %v1550
        %1670 = vmatprep.subr.bf16.mxu0 %v1549
        %1671 = vmatpush1.bf16.msra.mxu0 %v1548
        %1672 = vmatprep.subr.bf16.mxu0 %v1547
        %1673 = vmatpush1.bf16.msra.mxu0 %v1546
        %1674 = vmatprep.subr.bf16.mxu0 %v1545
        %1675 = vmatpush1.bf16.msra.mxu0 %v1544
        %1676 = vmatprep.subr.bf16.mxu0 %v1543
        %1677 = vmatpush1.bf16.msra.mxu0 %v1542
        %1678 = vmatprep.subr.bf16.mxu0 %v1541
        %1679 = vmatpush1.bf16.msra.mxu0 %v1540
        %1680 = vmatprep.subr.bf16.mxu0 %v1539
        %1681 = vmatpush1.bf16.msra.mxu0 %v1538
        %1682 = vmatprep.subr.bf16.mxu0 %v1569
        %1683 = vmatpush2.bf16.msra.mxu0 %v1568
        %1684 = vmatprep.subr.bf16.mxu0 %v1567
        %1685 = vmatpush2.bf16.msra.mxu0 %v1566
        %1686 = vmatprep.subr.bf16.mxu0 %v1565
        %1687 = vmatpush2.bf16.msra.mxu0 %v1564
        %1688 = vmatprep.subr.bf16.mxu0 %v1563
        %1689 = vmatpush2.bf16.msra.mxu0 %v1562
        %1690 = vmatprep.subr.bf16.mxu0 %v1561
        %1691 = vmatpush2.bf16.msra.mxu0 %v1560
        %1692 = vmatprep.subr.bf16.mxu0 %v1559
        %1693 = vmatpush2.bf16.msra.mxu0 %v1558
        %1694 = vmatprep.subr.bf16.mxu0 %v1557
        %1695 = vmatpush2.bf16.msra.mxu0 %v1556
        %1696 = vmatprep.subr.bf16.mxu0 %v1555
        %1697 = vmatpush2.bf16.msra.mxu0 %v1554
        %1698 = vmatprep.mubr.bf16.mxu0 %v1223
        %1699 = vmatmul.mubr.bf16.gmra.mxu0 %v1222
        %v1700 = vpop.f32.mrf.mxu0
        %v1701 = vadd.f32 %v1339, %v1700
        %v1702 = vpop.f32.mrf.mxu0
        %v1703 = vadd.f32 %v1343, %v1702
        %v1704 = vpop.f32.mrf.mxu0
        %v1705 = vadd.f32 %v1339, %v1704
        %v1706 = vpop.f32.mrf.mxu0
        %v1707 = vadd.f32 %v1343, %v1706
        %1708 = vmatprep.mubr.bf16.mxu0 %v1227
        %1709 = vmatmul.mubr.bf16.gmra.mxu0 %v1226
        %v1710 = vpop.f32.mrf.mxu0
        %v1711 = vadd.f32 %v1339, %v1710
        %v1712 = vpop.f32.mrf.mxu0
        %v1713 = vadd.f32 %v1343, %v1712
        %v1714 = vpop.f32.mrf.mxu0
        %v1715 = vadd.f32 %v1339, %v1714
        %v1716 = vpop.f32.mrf.mxu0
        %v1717 = vadd.f32 %v1343, %v1716
        %1718 = vmatprep.mubr.bf16.mxu0 %v1231
        %1719 = vmatmul.mubr.bf16.gmra.mxu0 %v1230
        %v1720 = vpop.f32.mrf.mxu0
        %v1721 = vadd.f32 %v1339, %v1720
        %v1722 = vpop.f32.mrf.mxu0
        %v1723 = vadd.f32 %v1343, %v1722
        %v1724 = vpop.f32.mrf.mxu0
        %v1725 = vadd.f32 %v1339, %v1724
        %v1726 = vpop.f32.mrf.mxu0
        %v1727 = vadd.f32 %v1343, %v1726
        %1728 = vmatprep.mubr.bf16.mxu0 %v1235
        %1729 = vmatmul.mubr.bf16.gmra.mxu0 %v1234
        %v1730 = vpop.f32.mrf.mxu0
        %v1731 = vadd.f32 %v1339, %v1730
        %v1732 = vpop.f32.mrf.mxu0
        %v1733 = vadd.f32 %v1343, %v1732
        %v1734 = vpop.f32.mrf.mxu0
        %v1735 = vadd.f32 %v1339, %v1734
        %v1736 = vpop.f32.mrf.mxu0
        %v1737 = vadd.f32 %v1343, %v1736
        %1738 = vmatprep.mubr.bf16.mxu0 %v1239
        %1739 = vmatmul.mubr.bf16.gmra.mxu0 %v1238
        %v1740 = vpop.f32.mrf.mxu0
        %v1741 = vadd.f32 %v1339, %v1740
        %v1742 = vpop.f32.mrf.mxu0
        %v1743 = vadd.f32 %v1343, %v1742
        %v1744 = vpop.f32.mrf.mxu0
        %v1745 = vadd.f32 %v1339, %v1744
        %v1746 = vpop.f32.mrf.mxu0
        %v1747 = vadd.f32 %v1343, %v1746
        %1748 = vmatprep.mubr.bf16.mxu0 %v1243
        %1749 = vmatmul.mubr.bf16.gmra.mxu0 %v1242
        %v1750 = vpop.f32.mrf.mxu0
        %v1751 = vadd.f32 %v1339, %v1750
        %v1752 = vpop.f32.mrf.mxu0
        %v1753 = vadd.f32 %v1343, %v1752
        %v1754 = vpop.f32.mrf.mxu0
        %v1755 = vadd.f32 %v1339, %v1754
        %v1756 = vpop.f32.mrf.mxu0
        %v1757 = vadd.f32 %v1343, %v1756
        %1758 = vmatprep.mubr.bf16.mxu0 %v1247
        %1759 = vmatmul.mubr.bf16.gmra.mxu0 %v1246
        %v1760 = vpop.f32.mrf.mxu0
        %v1761 = vadd.f32 %v1339, %v1760
        %v1762 = vpop.f32.mrf.mxu0
        %v1763 = vadd.f32 %v1343, %v1762
        %v1764 = vpop.f32.mrf.mxu0
        %v1765 = vadd.f32 %v1339, %v1764
        %v1766 = vpop.f32.mrf.mxu0
        %v1767 = vadd.f32 %v1343, %v1766
        %1768 = vmatprep.mubr.bf16.mxu0 %v1251
        %1769 = vmatmul.mubr.bf16.gmra.mxu0 %v1250
        %v1770 = vpop.f32.mrf.mxu0
        %v1771 = vadd.f32 %v1339, %v1770
        %v1772 = vpop.f32.mrf.mxu0
        %v1773 = vadd.f32 %v1343, %v1772
        %v1774 = vpop.f32.mrf.mxu0
        %v1775 = vadd.f32 %v1339, %v1774
        %v1776 = vpop.f32.mrf.mxu0
        %v1777 = vadd.f32 %v1343, %v1776
        %1778 = vmatprep.mubr.bf16.mxu0 %v1255
        %1779 = vmatmul.mubr.bf16.gmra.mxu0 %v1254
        %v1780 = vpop.f32.mrf.mxu0
        %v1781 = vadd.f32 %v1339, %v1780
        %v1782 = vpop.f32.mrf.mxu0
        %v1783 = vadd.f32 %v1343, %v1782
        %v1784 = vpop.f32.mrf.mxu0
        %v1785 = vadd.f32 %v1339, %v1784
        %v1786 = vpop.f32.mrf.mxu0
        %v1787 = vadd.f32 %v1343, %v1786
        %1788 = vmatprep.mubr.bf16.mxu0 %v1259
        %1789 = vmatmul.mubr.bf16.gmra.mxu0 %v1258
        %v1790 = vpop.f32.mrf.mxu0
        %v1791 = vadd.f32 %v1339, %v1790
        %v1792 = vpop.f32.mrf.mxu0
        %v1793 = vadd.f32 %v1343, %v1792
        %v1794 = vpop.f32.mrf.mxu0
        %v1795 = vadd.f32 %v1339, %v1794
        %v1796 = vpop.f32.mrf.mxu0
        %v1797 = vadd.f32 %v1343, %v1796
        %1798 = vmatprep.mubr.bf16.mxu0 %v1263
        %1799 = vmatmul.mubr.bf16.gmra.mxu0 %v1262
        %v1800 = vpop.f32.mrf.mxu0
        %v1801 = vadd.f32 %v1339, %v1800
        %v1802 = vpop.f32.mrf.mxu0
        %v1803 = vadd.f32 %v1343, %v1802
        %v1804 = vpop.f32.mrf.mxu0
        %v1805 = vadd.f32 %v1339, %v1804
        %v1806 = vpop.f32.mrf.mxu0
        %v1807 = vadd.f32 %v1343, %v1806
        %1808 = vmatprep.mubr.bf16.mxu0 %v1267
        %1809 = vmatmul.mubr.bf16.gmra.mxu0 %v1266
        %v1810 = vpop.f32.mrf.mxu0
        %v1811 = vadd.f32 %v1339, %v1810
        %v1812 = vpop.f32.mrf.mxu0
        %v1813 = vadd.f32 %v1343, %v1812
        %v1814 = vpop.f32.mrf.mxu0
        %v1815 = vadd.f32 %v1339, %v1814
        %v1816 = vpop.f32.mrf.mxu0
        %v1817 = vadd.f32 %v1343, %v1816
        %1818 = vdwg.mxu0
        %1819 = vmatprep.subr.bf16.mxu0 %v1585
        %1820 = vmatpush1.bf16.msra.mxu0 %v1584
        %1821 = vmatprep.subr.bf16.mxu0 %v1583
        %1822 = vmatpush1.bf16.msra.mxu0 %v1582
        %1823 = vmatprep.subr.bf16.mxu0 %v1581
        %1824 = vmatpush1.bf16.msra.mxu0 %v1580
        %1825 = vmatprep.subr.bf16.mxu0 %v1579
        %1826 = vmatpush1.bf16.msra.mxu0 %v1578
        %1827 = vmatprep.subr.bf16.mxu0 %v1577
        %1828 = vmatpush1.bf16.msra.mxu0 %v1576
        %1829 = vmatprep.subr.bf16.mxu0 %v1575
        %1830 = vmatpush1.bf16.msra.mxu0 %v1574
        %1831 = vmatprep.subr.bf16.mxu0 %v1573
        %1832 = vmatpush1.bf16.msra.mxu0 %v1572
        %1833 = vmatprep.subr.bf16.mxu0 %v1571
        %1834 = vmatpush1.bf16.msra.mxu0 %v1570
        %1835 = vmatprep.subr.bf16.mxu0 %v1601
        %1836 = vmatpush2.bf16.msra.mxu0 %v1600
        %1837 = vmatprep.subr.bf16.mxu0 %v1599
        %1838 = vmatpush2.bf16.msra.mxu0 %v1598
        %1839 = vmatprep.subr.bf16.mxu0 %v1597
        %1840 = vmatpush2.bf16.msra.mxu0 %v1596
        %1841 = vmatprep.subr.bf16.mxu0 %v1595
        %1842 = vmatpush2.bf16.msra.mxu0 %v1594
        %1843 = vmatprep.subr.bf16.mxu0 %v1593
        %1844 = vmatpush2.bf16.msra.mxu0 %v1592
        %1845 = vmatprep.subr.bf16.mxu0 %v1591
        %1846 = vmatpush2.bf16.msra.mxu0 %v1590
        %1847 = vmatprep.subr.bf16.mxu0 %v1589
        %1848 = vmatpush2.bf16.msra.mxu0 %v1588
        %1849 = vmatprep.subr.bf16.mxu0 %v1587
        %1850 = vmatpush2.bf16.msra.mxu0 %v1586
        %1851 = vmatprep.mubr.bf16.mxu0 %v1225
        %1852 = vmatmul.mubr.bf16.gmra.mxu0 %v1224
        %v1853 = vpop.f32.mrf.mxu0
        %v1854 = vadd.f32 %v1701, %v1853
        %v1855 = vpop.f32.mrf.mxu0
        %v1856 = vadd.f32 %v1703, %v1855
        %v1857 = vpop.f32.mrf.mxu0
        %v1858 = vadd.f32 %v1705, %v1857
        %v1859 = vpop.f32.mrf.mxu0
        %v1860 = vadd.f32 %v1707, %v1859
        %1861 = vmatprep.mubr.bf16.mxu0 %v1229
        %1862 = vmatmul.mubr.bf16.gmra.mxu0 %v1228
        %v1863 = vpop.f32.mrf.mxu0
        %v1864 = vadd.f32 %v1711, %v1863
        %v1865 = vpop.f32.mrf.mxu0
        %v1866 = vadd.f32 %v1713, %v1865
        %v1867 = vpop.f32.mrf.mxu0
        %v1868 = vadd.f32 %v1715, %v1867
        %v1869 = vpop.f32.mrf.mxu0
        %v1870 = vadd.f32 %v1717, %v1869
        %1871 = vmatprep.mubr.bf16.mxu0 %v1233
        %1872 = vmatmul.mubr.bf16.gmra.mxu0 %v1232
        %v1873 = vpop.f32.mrf.mxu0
        %v1874 = vadd.f32 %v1721, %v1873
        %v1875 = vpop.f32.mrf.mxu0
        %v1876 = vadd.f32 %v1723, %v1875
        %v1877 = vpop.f32.mrf.mxu0
        %v1878 = vadd.f32 %v1725, %v1877
        %v1879 = vpop.f32.mrf.mxu0
        %v1880 = vadd.f32 %v1727, %v1879
        %1881 = vmatprep.mubr.bf16.mxu0 %v1237
        %1882 = vmatmul.mubr.bf16.gmra.mxu0 %v1236
        %v1883 = vpop.f32.mrf.mxu0
        %v1884 = vadd.f32 %v1731, %v1883
        %v1885 = vpop.f32.mrf.mxu0
        %v1886 = vadd.f32 %v1733, %v1885
        %v1887 = vpop.f32.mrf.mxu0
        %v1888 = vadd.f32 %v1735, %v1887
        %v1889 = vpop.f32.mrf.mxu0
        %v1890 = vadd.f32 %v1737, %v1889
        %1891 = vmatprep.mubr.bf16.mxu0 %v1241
        %1892 = vmatmul.mubr.bf16.gmra.mxu0 %v1240
        %v1893 = vpop.f32.mrf.mxu0
        %v1894 = vadd.f32 %v1741, %v1893
        %v1895 = vpop.f32.mrf.mxu0
        %v1896 = vadd.f32 %v1743, %v1895
        %v1897 = vpop.f32.mrf.mxu0
        %v1898 = vadd.f32 %v1745, %v1897
        %v1899 = vpop.f32.mrf.mxu0
        %v1900 = vadd.f32 %v1747, %v1899
        %1901 = vmatprep.mubr.bf16.mxu0 %v1245
        %1902 = vmatmul.mubr.bf16.gmra.mxu0 %v1244
        %v1903 = vpop.f32.mrf.mxu0
        %v1904 = vadd.f32 %v1751, %v1903
        %v1905 = vpop.f32.mrf.mxu0
        %v1906 = vadd.f32 %v1753, %v1905
        %v1907 = vpop.f32.mrf.mxu0
        %v1908 = vadd.f32 %v1755, %v1907
        %v1909 = vpop.f32.mrf.mxu0
        %v1910 = vadd.f32 %v1757, %v1909
        %1911 = vmatprep.mubr.bf16.mxu0 %v1249
        %1912 = vmatmul.mubr.bf16.gmra.mxu0 %v1248
        %v1913 = vpop.f32.mrf.mxu0
        %v1914 = vadd.f32 %v1761, %v1913
        %v1915 = vpop.f32.mrf.mxu0
        %v1916 = vadd.f32 %v1763, %v1915
        %v1917 = vpop.f32.mrf.mxu0
        %v1918 = vadd.f32 %v1765, %v1917
        %v1919 = vpop.f32.mrf.mxu0
        %v1920 = vadd.f32 %v1767, %v1919
        %1921 = vmatprep.mubr.bf16.mxu0 %v1253
        %1922 = vmatmul.mubr.bf16.gmra.mxu0 %v1252
        %v1923 = vpop.f32.mrf.mxu0
        %v1924 = vadd.f32 %v1771, %v1923
        %v1925 = vpop.f32.mrf.mxu0
        %v1926 = vadd.f32 %v1773, %v1925
        %v1927 = vpop.f32.mrf.mxu0
        %v1928 = vadd.f32 %v1775, %v1927
        %v1929 = vpop.f32.mrf.mxu0
        %v1930 = vadd.f32 %v1777, %v1929
        %1931 = vmatprep.mubr.bf16.mxu0 %v1257
        %1932 = vmatmul.mubr.bf16.gmra.mxu0 %v1256
        %v1933 = vpop.f32.mrf.mxu0
        %v1934 = vadd.f32 %v1781, %v1933
        %v1935 = vpop.f32.mrf.mxu0
        %v1936 = vadd.f32 %v1783, %v1935
        %v1937 = vpop.f32.mrf.mxu0
        %v1938 = vadd.f32 %v1785, %v1937
        %v1939 = vpop.f32.mrf.mxu0
        %v1940 = vadd.f32 %v1787, %v1939
        %1941 = vmatprep.mubr.bf16.mxu0 %v1261
        %1942 = vmatmul.mubr.bf16.gmra.mxu0 %v1260
        %v1943 = vpop.f32.mrf.mxu0
        %v1944 = vadd.f32 %v1791, %v1943
        %v1945 = vpop.f32.mrf.mxu0
        %v1946 = vadd.f32 %v1793, %v1945
        %v1947 = vpop.f32.mrf.mxu0
        %v1948 = vadd.f32 %v1795, %v1947
        %v1949 = vpop.f32.mrf.mxu0
        %v1950 = vadd.f32 %v1797, %v1949
        %1951 = vmatprep.mubr.bf16.mxu0 %v1265
        %1952 = vmatmul.mubr.bf16.gmra.mxu0 %v1264
        %v1953 = vpop.f32.mrf.mxu0
        %v1954 = vadd.f32 %v1801, %v1953
        %v1955 = vpop.f32.mrf.mxu0
        %v1956 = vadd.f32 %v1803, %v1955
        %v1957 = vpop.f32.mrf.mxu0
        %v1958 = vadd.f32 %v1805, %v1957
        %v1959 = vpop.f32.mrf.mxu0
        %v1960 = vadd.f32 %v1807, %v1959
        %1961 = vmatprep.mubr.bf16.mxu0 %v1269
        %1962 = vmatmul.mubr.bf16.gmra.mxu0 %v1268
        %v1963 = vpop.f32.mrf.mxu0
        %v1964 = vadd.f32 %v1811, %v1963
        %v1965 = vpop.f32.mrf.mxu0
        %v1966 = vadd.f32 %v1813, %v1965
        %v1967 = vpop.f32.mrf.mxu0
        %v1968 = vadd.f32 %v1815, %v1967
        %v1969 = vpop.f32.mrf.mxu0
        %v1970 = vadd.f32 %v1817, %v1969
        %1971 = vdwg.mxu0
        %v1972 = vadd.f32 %v342, %v1854
        %v1973 = vadd.f32 %v343, %v1856
        %v1974 = vadd.f32 %v344, %v1858
        %v1975 = vadd.f32 %v345, %v1860
        %v1976 = vadd.f32 %v346, %v1864
        %v1977 = vadd.f32 %v347, %v1866
        %v1978 = vadd.f32 %v348, %v1868
        %v1979 = vadd.f32 %v349, %v1870
        %v1980 = vadd.f32 %v350, %v1874
        %v1981 = vadd.f32 %v351, %v1876
        %v1982 = vadd.f32 %v352, %v1878
        %v1983 = vadd.f32 %v353, %v1880
        %v1984 = vadd.f32 %v354, %v1884
        %v1985 = vadd.f32 %v355, %v1886
        %v1986 = vadd.f32 %v356, %v1888
        %v1987 = vadd.f32 %v357, %v1890
        %v1988 = vadd.f32 %v358, %v1894
        %v1989 = vadd.f32 %v359, %v1896
        %v1990 = vadd.f32 %v360, %v1898
        %v1991 = vadd.f32 %v361, %v1900
        %v1992 = vadd.f32 %v362, %v1904
        %v1993 = vadd.f32 %v363, %v1906
        %v1994 = vadd.f32 %v364, %v1908
        %v1995 = vadd.f32 %v365, %v1910
        %v1996 = vadd.f32 %v366, %v1914
        %v1997 = vadd.f32 %v367, %v1916
        %v1998 = vadd.f32 %v368, %v1918
        %v1999 = vadd.f32 %v369, %v1920
        %v2000 = vadd.f32 %v370, %v1924
        %v2001 = vadd.f32 %v371, %v1926
        %v2002 = vadd.f32 %v372, %v1928
        %v2003 = vadd.f32 %v373, %v1930
        %v2004 = vadd.f32 %v374, %v1934
        %v2005 = vadd.f32 %v375, %v1936
        %v2006 = vadd.f32 %v376, %v1938
        %v2007 = vadd.f32 %v377, %v1940
        %v2008 = vadd.f32 %v378, %v1944
        %v2009 = vadd.f32 %v379, %v1946
        %v2010 = vadd.f32 %v380, %v1948
        %v2011 = vadd.f32 %v381, %v1950
        %v2012 = vadd.f32 %v382, %v1954
        %v2013 = vadd.f32 %v383, %v1956
        %v2014 = vadd.f32 %v384, %v1958
        %v2015 = vadd.f32 %v385, %v1960
        %v2016 = vadd.f32 %v386, %v1964
        %v2017 = vadd.f32 %v387, %v1966
        %v2018 = vadd.f32 %v388, %v1968
        %v2019 = vadd.f32 %v389, %v1970
        %v2020 = vld [vmem:[%s5] sm:$0x3]
        %v2021 = vld [vmem:[%s6] sm:$0x3]
        %v2022 = vadd.f32 %v1972, %v1973
        %2023 = vadd.xlane.f32.xlu0 %v2022
        %v2024 = vpop.xlane.xlu0 %2023
        %v2025 = vadd.f32 %v1974, %v1975
        %2026 = vadd.xlane.f32.xlu0 %v2025
        %v2027 = vpop.xlane.xlu0 %2026
        %v2028 = vadd.f32 %v1976, %v1977
        %2029 = vadd.xlane.f32.xlu0 %v2028
        %v2030 = vpop.xlane.xlu0 %2029
        %v2031 = vadd.f32 %v1978, %v1979
        %2032 = vadd.xlane.f32.xlu0 %v2031
        %v2033 = vpop.xlane.xlu0 %2032
        %v2034 = vadd.f32 %v1980, %v1981
        %2035 = vadd.xlane.f32.xlu0 %v2034
        %v2036 = vpop.xlane.xlu0 %2035
        %v2037 = vadd.f32 %v1982, %v1983
        %2038 = vadd.xlane.f32.xlu0 %v2037
        %v2039 = vpop.xlane.xlu0 %2038
        %v2040 = vadd.f32 %v1984, %v1985
        %2041 = vadd.xlane.f32.xlu0 %v2040
        %v2042 = vpop.xlane.xlu0 %2041
        %v2043 = vadd.f32 %v1986, %v1987
        %2044 = vadd.xlane.f32.xlu0 %v2043
        %v2045 = vpop.xlane.xlu0 %2044
        %v2046 = vadd.f32 %v1988, %v1989
        %2047 = vadd.xlane.f32.xlu0 %v2046
        %v2048 = vpop.xlane.xlu0 %2047
        %v2049 = vadd.f32 %v1990, %v1991
        %2050 = vadd.xlane.f32.xlu0 %v2049
        %v2051 = vpop.xlane.xlu0 %2050
        %v2052 = vadd.f32 %v1992, %v1993
        %2053 = vadd.xlane.f32.xlu0 %v2052
        %v2054 = vpop.xlane.xlu0 %2053
        %v2055 = vadd.f32 %v1994, %v1995
        %2056 = vadd.xlane.f32.xlu0 %v2055
        %v2057 = vpop.xlane.xlu0 %2056
        %v2058 = vadd.f32 %v1996, %v1997
        %2059 = vadd.xlane.f32.xlu0 %v2058
        %v2060 = vpop.xlane.xlu0 %2059
        %v2061 = vadd.f32 %v1998, %v1999
        %2062 = vadd.xlane.f32.xlu0 %v2061
        %v2063 = vpop.xlane.xlu0 %2062
        %v2064 = vadd.f32 %v2000, %v2001
        %2065 = vadd.xlane.f32.xlu0 %v2064
        %v2066 = vpop.xlane.xlu0 %2065
        %v2067 = vadd.f32 %v2002, %v2003
        %2068 = vadd.xlane.f32.xlu0 %v2067
        %v2069 = vpop.xlane.xlu0 %2068
        %v2070 = vadd.f32 %v2004, %v2005
        %2071 = vadd.xlane.f32.xlu0 %v2070
        %v2072 = vpop.xlane.xlu0 %2071
        %v2073 = vadd.f32 %v2006, %v2007
        %2074 = vadd.xlane.f32.xlu0 %v2073
        %v2075 = vpop.xlane.xlu0 %2074
        %v2076 = vadd.f32 %v2008, %v2009
        %2077 = vadd.xlane.f32.xlu0 %v2076
        %v2078 = vpop.xlane.xlu0 %2077
        %v2079 = vadd.f32 %v2010, %v2011
        %2080 = vadd.xlane.f32.xlu0 %v2079
        %v2081 = vpop.xlane.xlu0 %2080
        %v2082 = vadd.f32 %v2012, %v2013
        %2083 = vadd.xlane.f32.xlu0 %v2082
        %v2084 = vpop.xlane.xlu0 %2083
        %v2085 = vadd.f32 %v2014, %v2015
        %2086 = vadd.xlane.f32.xlu0 %v2085
        %v2087 = vpop.xlane.xlu0 %2086
        %v2088 = vadd.f32 %v2016, %v2017
        %2089 = vadd.xlane.f32.xlu0 %v2088
        %v2090 = vpop.xlane.xlu0 %2089
        %v2091 = vadd.f32 %v2018, %v2019
        %2092 = vadd.xlane.f32.xlu0 %v2091
        %v2093 = vpop.xlane.xlu0 %2092
        %v2094 = vmul.f32 %v1972, %v1972
        %v2095 = vmul.f32 %v1973, %v1973
        %v2096 = vmul.f32 %v1974, %v1974
        %v2097 = vmul.f32 %v1975, %v1975
        %v2098 = vmul.f32 %v1976, %v1976
        %v2099 = vmul.f32 %v1977, %v1977
        %v2100 = vmul.f32 %v1978, %v1978
        %v2101 = vmul.f32 %v1979, %v1979
        %v2102 = vmul.f32 %v1980, %v1980
        %v2103 = vmul.f32 %v1981, %v1981
        %v2104 = vmul.f32 %v1982, %v1982
        %v2105 = vmul.f32 %v1983, %v1983
        %v2106 = vmul.f32 %v1984, %v1984
        %v2107 = vmul.f32 %v1985, %v1985
        %v2108 = vmul.f32 %v1986, %v1986
        %v2109 = vmul.f32 %v1987, %v1987
        %v2110 = vmul.f32 %v1988, %v1988
        %v2111 = vmul.f32 %v1989, %v1989
        %v2112 = vmul.f32 %v1990, %v1990
        %v2113 = vmul.f32 %v1991, %v1991
        %v2114 = vmul.f32 %v1992, %v1992
        %v2115 = vmul.f32 %v1993, %v1993
        %v2116 = vmul.f32 %v1994, %v1994
        %v2117 = vmul.f32 %v1995, %v1995
        %v2118 = vmul.f32 %v1996, %v1996
        %v2119 = vmul.f32 %v1997, %v1997
        %v2120 = vmul.f32 %v1998, %v1998
        %v2121 = vmul.f32 %v1999, %v1999
        %v2122 = vmul.f32 %v2000, %v2000
        %v2123 = vmul.f32 %v2001, %v2001
        %v2124 = vmul.f32 %v2002, %v2002
        %v2125 = vmul.f32 %v2003, %v2003
        %v2126 = vmul.f32 %v2004, %v2004
        %v2127 = vmul.f32 %v2005, %v2005
        %v2128 = vmul.f32 %v2006, %v2006
        %v2129 = vmul.f32 %v2007, %v2007
        %v2130 = vmul.f32 %v2008, %v2008
        %v2131 = vmul.f32 %v2009, %v2009
        %v2132 = vmul.f32 %v2010, %v2010
        %v2133 = vmul.f32 %v2011, %v2011
        %v2134 = vmul.f32 %v2012, %v2012
        %v2135 = vmul.f32 %v2013, %v2013
        %v2136 = vmul.f32 %v2014, %v2014
        %v2137 = vmul.f32 %v2015, %v2015
        %v2138 = vmul.f32 %v2016, %v2016
        %v2139 = vmul.f32 %v2017, %v2017
        %v2140 = vmul.f32 %v2018, %v2018
        %v2141 = vmul.f32 %v2019, %v2019
        %v2142 = vadd.f32 %v2094, %v2095
        %2143 = vadd.xlane.f32.xlu0 %v2142
        %v2144 = vpop.xlane.xlu0 %2143
        %v2145 = vadd.f32 %v2096, %v2097
        %2146 = vadd.xlane.f32.xlu0 %v2145
        %v2147 = vpop.xlane.xlu0 %2146
        %v2148 = vadd.f32 %v2098, %v2099
        %2149 = vadd.xlane.f32.xlu0 %v2148
        %v2150 = vpop.xlane.xlu0 %2149
        %v2151 = vadd.f32 %v2100, %v2101
        %2152 = vadd.xlane.f32.xlu0 %v2151
        %v2153 = vpop.xlane.xlu0 %2152
        %v2154 = vadd.f32 %v2102, %v2103
        %2155 = vadd.xlane.f32.xlu0 %v2154
        %v2156 = vpop.xlane.xlu0 %2155
        %v2157 = vadd.f32 %v2104, %v2105
        %2158 = vadd.xlane.f32.xlu0 %v2157
        %v2159 = vpop.xlane.xlu0 %2158
        %v2160 = vadd.f32 %v2106, %v2107
        %2161 = vadd.xlane.f32.xlu0 %v2160
        %v2162 = vpop.xlane.xlu0 %2161
        %v2163 = vadd.f32 %v2108, %v2109
        %2164 = vadd.xlane.f32.xlu0 %v2163
        %v2165 = vpop.xlane.xlu0 %2164
        %v2166 = vadd.f32 %v2110, %v2111
        %2167 = vadd.xlane.f32.xlu0 %v2166
        %v2168 = vpop.xlane.xlu0 %2167
        %v2169 = vadd.f32 %v2112, %v2113
        %2170 = vadd.xlane.f32.xlu0 %v2169
        %v2171 = vpop.xlane.xlu0 %2170
        %v2172 = vadd.f32 %v2114, %v2115
        %2173 = vadd.xlane.f32.xlu0 %v2172
        %v2174 = vpop.xlane.xlu0 %2173
        %v2175 = vadd.f32 %v2116, %v2117
        %2176 = vadd.xlane.f32.xlu0 %v2175
        %v2177 = vpop.xlane.xlu0 %2176
        %v2178 = vadd.f32 %v2118, %v2119
        %2179 = vadd.xlane.f32.xlu0 %v2178
        %v2180 = vpop.xlane.xlu0 %2179
        %v2181 = vadd.f32 %v2120, %v2121
        %2182 = vadd.xlane.f32.xlu0 %v2181
        %v2183 = vpop.xlane.xlu0 %2182
        %v2184 = vadd.f32 %v2122, %v2123
        %2185 = vadd.xlane.f32.xlu0 %v2184
        %v2186 = vpop.xlane.xlu0 %2185
        %v2187 = vadd.f32 %v2124, %v2125
        %2188 = vadd.xlane.f32.xlu0 %v2187
        %v2189 = vpop.xlane.xlu0 %2188
        %v2190 = vadd.f32 %v2126, %v2127
        %2191 = vadd.xlane.f32.xlu0 %v2190
        %v2192 = vpop.xlane.xlu0 %2191
        %v2193 = vadd.f32 %v2128, %v2129
        %2194 = vadd.xlane.f32.xlu0 %v2193
        %v2195 = vpop.xlane.xlu0 %2194
        %v2196 = vadd.f32 %v2130, %v2131
        %2197 = vadd.xlane.f32.xlu0 %v2196
        %v2198 = vpop.xlane.xlu0 %2197
        %v2199 = vadd.f32 %v2132, %v2133
        %2200 = vadd.xlane.f32.xlu0 %v2199
        %v2201 = vpop.xlane.xlu0 %2200
        %v2202 = vadd.f32 %v2134, %v2135
        %2203 = vadd.xlane.f32.xlu0 %v2202
        %v2204 = vpop.xlane.xlu0 %2203
        %v2205 = vadd.f32 %v2136, %v2137
        %2206 = vadd.xlane.f32.xlu0 %v2205
        %v2207 = vpop.xlane.xlu0 %2206
        %v2208 = vadd.f32 %v2138, %v2139
        %2209 = vadd.xlane.f32.xlu0 %v2208
        %v2210 = vpop.xlane.xlu0 %2209
        %v2211 = vadd.f32 %v2140, %v2141
        %2212 = vadd.xlane.f32.xlu0 %v2211
        %v2213 = vpop.xlane.xlu0 %2212
        %v2214 = vmul.f32 %v2024, 0.00390625
        %v2215 = vmul.f32 %v2027, 0.00390625
        %v2216 = vmul.f32 %v2030, 0.00390625
        %v2217 = vmul.f32 %v2033, 0.00390625
        %v2218 = vmul.f32 %v2036, 0.00390625
        %v2219 = vmul.f32 %v2039, 0.00390625
        %v2220 = vmul.f32 %v2042, 0.00390625
        %v2221 = vmul.f32 %v2045, 0.00390625
        %v2222 = vmul.f32 %v2048, 0.00390625
        %v2223 = vmul.f32 %v2051, 0.00390625
        %v2224 = vmul.f32 %v2054, 0.00390625
        %v2225 = vmul.f32 %v2057, 0.00390625
        %v2226 = vmul.f32 %v2060, 0.00390625
        %v2227 = vmul.f32 %v2063, 0.00390625
        %v2228 = vmul.f32 %v2066, 0.00390625
        %v2229 = vmul.f32 %v2069, 0.00390625
        %v2230 = vmul.f32 %v2072, 0.00390625
        %v2231 = vmul.f32 %v2075, 0.00390625
        %v2232 = vmul.f32 %v2078, 0.00390625
        %v2233 = vmul.f32 %v2081, 0.00390625
        %v2234 = vmul.f32 %v2084, 0.00390625
        %v2235 = vmul.f32 %v2087, 0.00390625
        %v2236 = vmul.f32 %v2090, 0.00390625
        %v2237 = vmul.f32 %v2093, 0.00390625
        %v2238 = vmul.f32 %v2144, 0.00390625
        %v2239 = vmul.f32 %v2147, 0.00390625
        %v2240 = vmul.f32 %v2150, 0.00390625
        %v2241 = vmul.f32 %v2153, 0.00390625
        %v2242 = vmul.f32 %v2156, 0.00390625
        %v2243 = vmul.f32 %v2159, 0.00390625
        %v2244 = vmul.f32 %v2162, 0.00390625
        %v2245 = vmul.f32 %v2165, 0.00390625
        %v2246 = vmul.f32 %v2168, 0.00390625
        %v2247 = vmul.f32 %v2171, 0.00390625
        %v2248 = vmul.f32 %v2174, 0.00390625
        %v2249 = vmul.f32 %v2177, 0.00390625
        %v2250 = vmul.f32 %v2180, 0.00390625
        %v2251 = vmul.f32 %v2183, 0.00390625
        %v2252 = vmul.f32 %v2186, 0.00390625
        %v2253 = vmul.f32 %v2189, 0.00390625
        %v2254 = vmul.f32 %v2192, 0.00390625
        %v2255 = vmul.f32 %v2195, 0.00390625
        %v2256 = vmul.f32 %v2198, 0.00390625
        %v2257 = vmul.f32 %v2201, 0.00390625
        %v2258 = vmul.f32 %v2204, 0.00390625
        %v2259 = vmul.f32 %v2207, 0.00390625
        %v2260 = vmul.f32 %v2210, 0.00390625
        %v2261 = vmul.f32 %v2213, 0.00390625
        %v2262 = vmul.f32 %v2214, %v2214
        %v2263 = vmul.f32 %v2215, %v2215
        %v2264 = vmul.f32 %v2216, %v2216
        %v2265 = vmul.f32 %v2217, %v2217
        %v2266 = vmul.f32 %v2218, %v2218
        %v2267 = vmul.f32 %v2219, %v2219
        %v2268 = vmul.f32 %v2220, %v2220
        %v2269 = vmul.f32 %v2221, %v2221
        %v2270 = vmul.f32 %v2222, %v2222
        %v2271 = vmul.f32 %v2223, %v2223
        %v2272 = vmul.f32 %v2224, %v2224
        %v2273 = vmul.f32 %v2225, %v2225
        %v2274 = vmul.f32 %v2226, %v2226
        %v2275 = vmul.f32 %v2227, %v2227
        %v2276 = vmul.f32 %v2228, %v2228
        %v2277 = vmul.f32 %v2229, %v2229
        %v2278 = vmul.f32 %v2230, %v2230
        %v2279 = vmul.f32 %v2231, %v2231
        %v2280 = vmul.f32 %v2232, %v2232
        %v2281 = vmul.f32 %v2233, %v2233
        %v2282 = vmul.f32 %v2234, %v2234
        %v2283 = vmul.f32 %v2235, %v2235
        %v2284 = vmul.f32 %v2236, %v2236
        %v2285 = vmul.f32 %v2237, %v2237
        %v2286 = vsub.f32 %v2238, %v2262
        %v2287 = vsub.f32 %v2239, %v2263
        %v2288 = vsub.f32 %v2240, %v2264
        %v2289 = vsub.f32 %v2241, %v2265
        %v2290 = vsub.f32 %v2242, %v2266
        %v2291 = vsub.f32 %v2243, %v2267
        %v2292 = vsub.f32 %v2244, %v2268
        %v2293 = vsub.f32 %v2245, %v2269
        %v2294 = vsub.f32 %v2246, %v2270
        %v2295 = vsub.f32 %v2247, %v2271
        %v2296 = vsub.f32 %v2248, %v2272
        %v2297 = vsub.f32 %v2249, %v2273
        %v2298 = vsub.f32 %v2250, %v2274
        %v2299 = vsub.f32 %v2251, %v2275
        %v2300 = vsub.f32 %v2252, %v2276
        %v2301 = vsub.f32 %v2253, %v2277
        %v2302 = vsub.f32 %v2254, %v2278
        %v2303 = vsub.f32 %v2255, %v2279
        %v2304 = vsub.f32 %v2256, %v2280
        %v2305 = vsub.f32 %v2257, %v2281
        %v2306 = vsub.f32 %v2258, %v2282
        %v2307 = vsub.f32 %v2259, %v2283
        %v2308 = vsub.f32 %v2260, %v2284
        %v2309 = vsub.f32 %v2261, %v2285
        %v2310 = vsub.f32 %v1972, %v2214
        %v2311 = vsub.f32 %v1973, %v2214
        %v2312 = vsub.f32 %v1974, %v2215
        %v2313 = vsub.f32 %v1975, %v2215
        %v2314 = vsub.f32 %v1976, %v2216
        %v2315 = vsub.f32 %v1977, %v2216
        %v2316 = vsub.f32 %v1978, %v2217
        %v2317 = vsub.f32 %v1979, %v2217
        %v2318 = vsub.f32 %v1980, %v2218
        %v2319 = vsub.f32 %v1981, %v2218
        %v2320 = vsub.f32 %v1982, %v2219
        %v2321 = vsub.f32 %v1983, %v2219
        %v2322 = vsub.f32 %v1984, %v2220
        %v2323 = vsub.f32 %v1985, %v2220
        %v2324 = vsub.f32 %v1986, %v2221
        %v2325 = vsub.f32 %v1987, %v2221
        %v2326 = vsub.f32 %v1988, %v2222
        %v2327 = vsub.f32 %v1989, %v2222
        %v2328 = vsub.f32 %v1990, %v2223
        %v2329 = vsub.f32 %v1991, %v2223
        %v2330 = vsub.f32 %v1992, %v2224
        %v2331 = vsub.f32 %v1993, %v2224
        %v2332 = vsub.f32 %v1994, %v2225
        %v2333 = vsub.f32 %v1995, %v2225
        %v2334 = vsub.f32 %v1996, %v2226
        %v2335 = vsub.f32 %v1997, %v2226
        %v2336 = vsub.f32 %v1998, %v2227
        %v2337 = vsub.f32 %v1999, %v2227
        %v2338 = vsub.f32 %v2000, %v2228
        %v2339 = vsub.f32 %v2001, %v2228
        %v2340 = vsub.f32 %v2002, %v2229
        %v2341 = vsub.f32 %v2003, %v2229
        %v2342 = vsub.f32 %v2004, %v2230
        %v2343 = vsub.f32 %v2005, %v2230
        %v2344 = vsub.f32 %v2006, %v2231
        %v2345 = vsub.f32 %v2007, %v2231
        %v2346 = vsub.f32 %v2008, %v2232
        %v2347 = vsub.f32 %v2009, %v2232
        %v2348 = vsub.f32 %v2010, %v2233
        %v2349 = vsub.f32 %v2011, %v2233
        %v2350 = vsub.f32 %v2012, %v2234
        %v2351 = vsub.f32 %v2013, %v2234
        %v2352 = vsub.f32 %v2014, %v2235
        %v2353 = vsub.f32 %v2015, %v2235
        %v2354 = vsub.f32 %v2016, %v2236
        %v2355 = vsub.f32 %v2017, %v2236
        %v2356 = vsub.f32 %v2018, %v2237
        %v2357 = vsub.f32 %v2019, %v2237
        %v2358 = vadd.f32 %v2286, 1e-05
        %v2359 = vadd.f32 %v2287, 1e-05
        %v2360 = vadd.f32 %v2288, 1e-05
        %v2361 = vadd.f32 %v2289, 1e-05
        %v2362 = vadd.f32 %v2290, 1e-05
        %v2363 = vadd.f32 %v2291, 1e-05
        %v2364 = vadd.f32 %v2292, 1e-05
        %v2365 = vadd.f32 %v2293, 1e-05
        %v2366 = vadd.f32 %v2294, 1e-05
        %v2367 = vadd.f32 %v2295, 1e-05
        %v2368 = vadd.f32 %v2296, 1e-05
        %v2369 = vadd.f32 %v2297, 1e-05
        %v2370 = vadd.f32 %v2298, 1e-05
        %v2371 = vadd.f32 %v2299, 1e-05
        %v2372 = vadd.f32 %v2300, 1e-05
        %v2373 = vadd.f32 %v2301, 1e-05
        %v2374 = vadd.f32 %v2302, 1e-05
        %v2375 = vadd.f32 %v2303, 1e-05
        %v2376 = vadd.f32 %v2304, 1e-05
        %v2377 = vadd.f32 %v2305, 1e-05
        %v2378 = vadd.f32 %v2306, 1e-05
        %v2379 = vadd.f32 %v2307, 1e-05
        %v2380 = vadd.f32 %v2308, 1e-05
        %v2381 = vadd.f32 %v2309, 1e-05
        %v2382 = vrsqrt.pop %v2358
        %v2383 = vrsqrt.pop %v2359
        %v2384 = vrsqrt.pop %v2360
        %v2385 = vrsqrt.pop %v2361
        %v2386 = vrsqrt.pop %v2362
        %v2387 = vrsqrt.pop %v2363
        %v2388 = vrsqrt.pop %v2364
        %v2389 = vrsqrt.pop %v2365
        %v2390 = vrsqrt.pop %v2366
        %v2391 = vrsqrt.pop %v2367
        %v2392 = vrsqrt.pop %v2368
        %v2393 = vrsqrt.pop %v2369
        %v2394 = vrsqrt.pop %v2370
        %v2395 = vrsqrt.pop %v2371
        %v2396 = vrsqrt.pop %v2372
        %v2397 = vrsqrt.pop %v2373
        %v2398 = vrsqrt.pop %v2374
        %v2399 = vrsqrt.pop %v2375
        %v2400 = vrsqrt.pop %v2376
        %v2401 = vrsqrt.pop %v2377
        %v2402 = vrsqrt.pop %v2378
        %v2403 = vrsqrt.pop %v2379
        %v2404 = vrsqrt.pop %v2380
        %v2405 = vrsqrt.pop %v2381
        %v2406 = vmul.f32 %v2310, %v2382
        %v2407 = vmul.f32 %v2311, %v2382
        %v2408 = vmul.f32 %v2312, %v2383
        %v2409 = vmul.f32 %v2313, %v2383
        %v2410 = vmul.f32 %v2314, %v2384
        %v2411 = vmul.f32 %v2315, %v2384
        %v2412 = vmul.f32 %v2316, %v2385
        %v2413 = vmul.f32 %v2317, %v2385
        %v2414 = vmul.f32 %v2318, %v2386
        %v2415 = vmul.f32 %v2319, %v2386
        %v2416 = vmul.f32 %v2320, %v2387
        %v2417 = vmul.f32 %v2321, %v2387
        %v2418 = vmul.f32 %v2322, %v2388
        %v2419 = vmul.f32 %v2323, %v2388
        %v2420 = vmul.f32 %v2324, %v2389
        %v2421 = vmul.f32 %v2325, %v2389
        %v2422 = vmul.f32 %v2326, %v2390
        %v2423 = vmul.f32 %v2327, %v2390
        %v2424 = vmul.f32 %v2328, %v2391
        %v2425 = vmul.f32 %v2329, %v2391
        %v2426 = vmul.f32 %v2330, %v2392
        %v2427 = vmul.f32 %v2331, %v2392
        %v2428 = vmul.f32 %v2332, %v2393
        %v2429 = vmul.f32 %v2333, %v2393
        %v2430 = vmul.f32 %v2334, %v2394
        %v2431 = vmul.f32 %v2335, %v2394
        %v2432 = vmul.f32 %v2336, %v2395
        %v2433 = vmul.f32 %v2337, %v2395
        %v2434 = vmul.f32 %v2338, %v2396
        %v2435 = vmul.f32 %v2339, %v2396
        %v2436 = vmul.f32 %v2340, %v2397
        %v2437 = vmul.f32 %v2341, %v2397
        %v2438 = vmul.f32 %v2342, %v2398
        %v2439 = vmul.f32 %v2343, %v2398
        %v2440 = vmul.f32 %v2344, %v2399
        %v2441 = vmul.f32 %v2345, %v2399
        %v2442 = vmul.f32 %v2346, %v2400
        %v2443 = vmul.f32 %v2347, %v2400
        %v2444 = vmul.f32 %v2348, %v2401
        %v2445 = vmul.f32 %v2349, %v2401
        %v2446 = vmul.f32 %v2350, %v2402
        %v2447 = vmul.f32 %v2351, %v2402
        %v2448 = vmul.f32 %v2352, %v2403
        %v2449 = vmul.f32 %v2353, %v2403
        %v2450 = vmul.f32 %v2354, %v2404
        %v2451 = vmul.f32 %v2355, %v2404
        %v2452 = vmul.f32 %v2356, %v2405
        %v2453 = vmul.f32 %v2357, %v2405
        %v2455 = vlaneseq
        %v2456 = vshrl.u32 %v2455, 7
        %v2457 = vsub.s32 0, %v2456
        %v2458 = vrot.slane %v2020, %v2457
        %v2459 = vlaneseq
        %v2460 = vshrl.u32 %v2459, 7
        %v2461 = vsub.s32 1, %v2460
        %v2462 = vrot.slane %v2020, %v2461
        %v2465 = vmul.f32 %v2406, %v2458
        %v2466 = vmul.f32 %v2407, %v2462
        %v2467 = vmul.f32 %v2408, %v2458
        %v2468 = vmul.f32 %v2409, %v2462
        %v2469 = vmul.f32 %v2410, %v2458
        %v2470 = vmul.f32 %v2411, %v2462
        %v2471 = vmul.f32 %v2412, %v2458
        %v2472 = vmul.f32 %v2413, %v2462
        %v2473 = vmul.f32 %v2414, %v2458
        %v2474 = vmul.f32 %v2415, %v2462
        %v2475 = vmul.f32 %v2416, %v2458
        %v2476 = vmul.f32 %v2417, %v2462
        %v2477 = vmul.f32 %v2418, %v2458
        %v2478 = vmul.f32 %v2419, %v2462
        %v2479 = vmul.f32 %v2420, %v2458
        %v2480 = vmul.f32 %v2421, %v2462
        %v2481 = vmul.f32 %v2422, %v2458
        %v2482 = vmul.f32 %v2423, %v2462
        %v2483 = vmul.f32 %v2424, %v2458
        %v2484 = vmul.f32 %v2425, %v2462
        %v2485 = vmul.f32 %v2426, %v2458
        %v2486 = vmul.f32 %v2427, %v2462
        %v2487 = vmul.f32 %v2428, %v2458
        %v2488 = vmul.f32 %v2429, %v2462
        %v2489 = vmul.f32 %v2430, %v2458
        %v2490 = vmul.f32 %v2431, %v2462
        %v2491 = vmul.f32 %v2432, %v2458
        %v2492 = vmul.f32 %v2433, %v2462
        %v2493 = vmul.f32 %v2434, %v2458
        %v2494 = vmul.f32 %v2435, %v2462
        %v2495 = vmul.f32 %v2436, %v2458
        %v2496 = vmul.f32 %v2437, %v2462
        %v2497 = vmul.f32 %v2438, %v2458
        %v2498 = vmul.f32 %v2439, %v2462
        %v2499 = vmul.f32 %v2440, %v2458
        %v2500 = vmul.f32 %v2441, %v2462
        %v2501 = vmul.f32 %v2442, %v2458
        %v2502 = vmul.f32 %v2443, %v2462
        %v2503 = vmul.f32 %v2444, %v2458
        %v2504 = vmul.f32 %v2445, %v2462
        %v2505 = vmul.f32 %v2446, %v2458
        %v2506 = vmul.f32 %v2447, %v2462
        %v2507 = vmul.f32 %v2448, %v2458
        %v2508 = vmul.f32 %v2449, %v2462
        %v2509 = vmul.f32 %v2450, %v2458
        %v2510 = vmul.f32 %v2451, %v2462
        %v2511 = vmul.f32 %v2452, %v2458
        %v2512 = vmul.f32 %v2453, %v2462
        %v2514 = vlaneseq
        %v2515 = vshrl.u32 %v2514, 7
        %v2516 = vsub.s32 0, %v2515
        %v2517 = vrot.slane %v2021, %v2516
        %v2518 = vlaneseq
        %v2519 = vshrl.u32 %v2518, 7
        %v2520 = vsub.s32 1, %v2519
        %v2521 = vrot.slane %v2021, %v2520
        %v2524 = vadd.f32 %v2465, %v2517
        %v2525 = vadd.f32 %v2466, %v2521
        %v2526 = vadd.f32 %v2467, %v2517
        %v2527 = vadd.f32 %v2468, %v2521
        %v2528 = vadd.f32 %v2469, %v2517
        %v2529 = vadd.f32 %v2470, %v2521
        %v2530 = vadd.f32 %v2471, %v2517
        %v2531 = vadd.f32 %v2472, %v2521
        %v2532 = vadd.f32 %v2473, %v2517
        %v2533 = vadd.f32 %v2474, %v2521
        %v2534 = vadd.f32 %v2475, %v2517
        %v2535 = vadd.f32 %v2476, %v2521
        %v2536 = vadd.f32 %v2477, %v2517
        %v2537 = vadd.f32 %v2478, %v2521
        %v2538 = vadd.f32 %v2479, %v2517
        %v2539 = vadd.f32 %v2480, %v2521
        %v2540 = vadd.f32 %v2481, %v2517
        %v2541 = vadd.f32 %v2482, %v2521
        %v2542 = vadd.f32 %v2483, %v2517
        %v2543 = vadd.f32 %v2484, %v2521
        %v2544 = vadd.f32 %v2485, %v2517
        %v2545 = vadd.f32 %v2486, %v2521
        %v2546 = vadd.f32 %v2487, %v2517
        %v2547 = vadd.f32 %v2488, %v2521
        %v2548 = vadd.f32 %v2489, %v2517
        %v2549 = vadd.f32 %v2490, %v2521
        %v2550 = vadd.f32 %v2491, %v2517
        %v2551 = vadd.f32 %v2492, %v2521
        %v2552 = vadd.f32 %v2493, %v2517
        %v2553 = vadd.f32 %v2494, %v2521
        %v2554 = vadd.f32 %v2495, %v2517
        %v2555 = vadd.f32 %v2496, %v2521
        %v2556 = vadd.f32 %v2497, %v2517
        %v2557 = vadd.f32 %v2498, %v2521
        %v2558 = vadd.f32 %v2499, %v2517
        %v2559 = vadd.f32 %v2500, %v2521
        %v2560 = vadd.f32 %v2501, %v2517
        %v2561 = vadd.f32 %v2502, %v2521
        %v2562 = vadd.f32 %v2503, %v2517
        %v2563 = vadd.f32 %v2504, %v2521
        %v2564 = vadd.f32 %v2505, %v2517
        %v2565 = vadd.f32 %v2506, %v2521
        %v2566 = vadd.f32 %v2507, %v2517
        %v2567 = vadd.f32 %v2508, %v2521
        %v2568 = vadd.f32 %v2509, %v2517
        %v2569 = vadd.f32 %v2510, %v2521
        %v2570 = vadd.f32 %v2511, %v2517
        %v2571 = vadd.f32 %v2512, %v2521
        %2572 = vst [vmem:[%s339] sm:$0xff] %v2524
        %2573 = vst [vmem:[%s339 + $0x8] sm:$0xff] %v2525
        %2574 = vst [vmem:[%s339 + $0x10] sm:$0xff] %v2526
        %2575 = vst [vmem:[%s339 + $0x18] sm:$0xff] %v2527
        %2576 = vst [vmem:[%s339 + $0x20] sm:$0xff] %v2528
        %2577 = vst [vmem:[%s339 + $0x28] sm:$0xff] %v2529
        %2578 = vst [vmem:[%s339 + $0x30] sm:$0xff] %v2530
        %2579 = vst [vmem:[%s339 + $0x38] sm:$0xff] %v2531
        %2580 = vst [vmem:[%s339 + $0x40] sm:$0xff] %v2532
        %2581 = vst [vmem:[%s339 + $0x48] sm:$0xff] %v2533
        %2582 = vst [vmem:[%s339 + $0x50] sm:$0xff] %v2534
        %2583 = vst [vmem:[%s339 + $0x58] sm:$0xff] %v2535
        %2584 = vst [vmem:[%s339 + $0x60] sm:$0xff] %v2536
        %2585 = vst [vmem:[%s339 + $0x68] sm:$0xff] %v2537
        %2586 = vst [vmem:[%s339 + $0x70] sm:$0xff] %v2538
        %2587 = vst [vmem:[%s339 + $0x78] sm:$0xff] %v2539
        %2588 = vst [vmem:[%s339 + $0x80] sm:$0xff] %v2540
        %2589 = vst [vmem:[%s339 + $0x88] sm:$0xff] %v2541
        %2590 = vst [vmem:[%s339 + $0x90] sm:$0xff] %v2542
        %2591 = vst [vmem:[%s339 + $0x98] sm:$0xff] %v2543
        %2592 = vst [vmem:[%s339 + $0xa0] sm:$0xff] %v2544
        %2593 = vst [vmem:[%s339 + $0xa8] sm:$0xff] %v2545
        %2594 = vst [vmem:[%s339 + $0xb0] sm:$0xff] %v2546
        %2595 = vst [vmem:[%s339 + $0xb8] sm:$0xff] %v2547
        %2596 = vst [vmem:[%s339 + $0xc0] sm:$0xff] %v2548
        %2597 = vst [vmem:[%s339 + $0xc8] sm:$0xff] %v2549
        %2598 = vst [vmem:[%s339 + $0xd0] sm:$0xff] %v2550
        %2599 = vst [vmem:[%s339 + $0xd8] sm:$0xff] %v2551
        %2600 = vst [vmem:[%s339 + $0xe0] sm:$0xff] %v2552
        %2601 = vst [vmem:[%s339 + $0xe8] sm:$0xff] %v2553
        %2602 = vst [vmem:[%s339 + $0xf0] sm:$0xff] %v2554
        %2603 = vst [vmem:[%s339 + $0xf8] sm:$0xff] %v2555
        %2604 = vst [vmem:[%s339 + $0x100] sm:$0xff] %v2556
        %2605 = vst [vmem:[%s339 + $0x108] sm:$0xff] %v2557
        %2606 = vst [vmem:[%s339 + $0x110] sm:$0xff] %v2558
        %2607 = vst [vmem:[%s339 + $0x118] sm:$0xff] %v2559
        %2608 = vst [vmem:[%s339 + $0x120] sm:$0xff] %v2560
        %2609 = vst [vmem:[%s339 + $0x128] sm:$0xff] %v2561
        %2610 = vst [vmem:[%s339 + $0x130] sm:$0xff] %v2562
        %2611 = vst [vmem:[%s339 + $0x138] sm:$0xff] %v2563
        %2612 = vst [vmem:[%s339 + $0x140] sm:$0xff] %v2564
        %2613 = vst [vmem:[%s339 + $0x148] sm:$0xff] %v2565
        %2614 = vst [vmem:[%s339 + $0x150] sm:$0xff] %v2566
        %2615 = vst [vmem:[%s339 + $0x158] sm:$0xff] %v2567
        %2616 = vst [vmem:[%s339 + $0x160] sm:$0xff] %v2568
        %2617 = vst [vmem:[%s339 + $0x168] sm:$0xff] %v2569
        %2618 = vst [vmem:[%s339 + $0x170] sm:$0xff] %v2570
        %2619 = vst [vmem:[%s339 + $0x178] sm:$0xff] %v2571
        %s2620 = sand.u32 %s186, 1
        %s2621 = scalar_lea.sflag [#allocation4], %s2620
        %s2622 = sand.u32 %s186, 1
        %s2623 = smul.addr %s2622, 384
        %s2624 = scalar_lea.vmem [#allocation10], %s2623
        // Predicated region
        $region65: #{tpu_custom_call.1} parent=47 // pred_check
          %p2625 = pneg %p196
        $region66: #{tpu_custom_call.1} parent=47 // pred_check_branch
          %2627 = sbr.rel (%p2625) target = $region68
        $region67: #{tpu_custom_call.1} parent=47 // pred_region
          %s2628 = smul.u32 24, %s26
          %s2630 = ssub.s32 6144, 6144
          %2631 = vsyncadd %s2621, %s2630
          %s2632 = smul.addr %s2628, 2
          %s2633 = smul.addr %s2632, 128
          %s2634 = scalar_lea.hbm %s7, %s2633
          %s2635 = sshll.u32 %s2624, 4
          %s2636 = int_to_ptr.vmem [resolvable:$true] %s2635
          %2641 = dma.vmem_to_hbm [thread:$0]  %s2636, 6144, %s2634, %s2621, 256, 256, 16
        $region68: #{tpu_custom_call.1} parent=47 // pred_fallthru
          _
      $region48: #{tpu_custom_call.1} parent=5 // pred_fallthru
        _
      %p2642 = scmp.le.s32.totalorder 2, %s21
      // Predicated region
      $region69: #{tpu_custom_call.1} parent=5 // pred_check
        %p2643 = pneg %p2642
      $region70: #{tpu_custom_call.1} parent=5 // pred_check_branch
        %2645 = sbr.rel (%p2643) target = $region72
      $region71: #{tpu_custom_call.1} parent=5 // pred_region
        %s2646 = ssub.s32 %s21, 2
        // Predicated region
        $region73: #{tpu_custom_call.1} parent=71 // pred_check
          %p2647 = pneg %p202
        $region74: #{tpu_custom_call.1} parent=71 // pred_check_branch
          %2649 = sbr.rel (%p2647) target = $region76
        $region75: #{tpu_custom_call.1} parent=71 // pred_region
          %s2650 = sand.u32 %s187, 1
          %s2651 = scalar_lea.sflag [#allocation4], %s2650
          %s2652 = sand.u32 %s187, 1
          %s2653 = smul.addr %s2652, 384
          %s2654 = scalar_lea.vmem [#allocation10], %s2653
          %2655 = dma.done %s2651, 6144
        $region76: #{tpu_custom_call.1} parent=71 // pred_fallthru
          _
      $region72: #{tpu_custom_call.1} parent=5 // pred_fallthru
        _
    $region6: #{tpu_custom_call.1} parent=1 // loop_footer
      %s25 = sadd.s32 1, %s21
    $region7: #{tpu_custom_call.1} parent=1 // loop_footer_branch
      %20 = sbr.rel target = $region3
    $region8: #{tpu_custom_call.1} parent=1 // loop_exit
      _
    %2656 = vsyncpa [#allocation3], 1
    %s2657 = scalar_lea.sflag [#allocation3], 1
    %2658 = vsyncpa %s2657, 1
    %2659 = vsyncpa [#allocation6], 1
    %2660 = vsyncpa [#allocation9], 1
    %2661 = vsyncpa [#allocation4], 1
    %s2662 = scalar_lea.sflag [#allocation4], 1
    %2663 = vsyncpa %s2662, 1

</llo_original>
